<compile_context>
chip_gen: v7x
topology: tpu7x:2x2x1
jax: 0.10.0
libtpu: 0.0.40
codegen_flags: <defaults>
</compile_context>

<pallas_src>
import functools

import jax
import jax.numpy as jnp
from jax.experimental import pallas as pl
from jax.experimental.pallas import tpu as pltpu


def _unet_block_kernel(patches_ref, w1_ref, b1_ref, gamma_ref, beta_ref,
                       w2_ref, b2_ref, mask_ref, o_ref,
                       *, W, KH, KW, pad, eps, use_leaky):
    """Fused conv1 + act + BN(train) + conv2 + act.

    patches_ref: (KH*KW*Cin, B*H*W)  bf16   im2col patches of the input (wrapper-built)
    w1_ref     : (Cout, KH*KW*Cin)   bf16   conv1 weight (im2col layout)
    b1_ref     : (Cout, 1)           f32    conv1 bias
    gamma_ref  : (Cout, 1)           f32    BN scale
    beta_ref   : (Cout, 1)           f32    BN shift
    w2_ref     : (KH*KW, Cout, Cout) bf16   conv2 weight, one (Cout, Cin) slab per tap
    b2_ref     : (Cout, 1)           f32    conv2 bias
    mask_ref   : (KH*KW, B*H*W)      f32    1.0 where the tap stays inside the image
    o_ref      : (Cout, B*H*W)       f32    output (lane-dense)
    """
    Cout, BHW = o_ref.shape

    def act(v):
        # Module uses nn.LeakyReLU(0.2) when use_leaky=True, else nn.ReLU().
        return jnp.where(v > 0, v, 0.2 * v) if use_leaky else jnp.maximum(v, 0.0)

    # ---- layer 1: conv as ONE bf16 MXU matmul, f32 accumulate + bias + act ----
    y = jnp.dot(w1_ref[...], patches_ref[...],
                preferred_element_type=jnp.float32)          # (Cout, BHW) f32
    y = act(y + b1_ref[...])

    # ---- BatchNorm2d, training-mode batch stats over (N,H,W), single pass ----
    inv_n = 1.0 / BHW
    s1 = jnp.sum(y, axis=1, keepdims=True)                   # (Cout, 1)
    s2 = jnp.sum(y * y, axis=1, keepdims=True)               # (Cout, 1)
    mean = s1 * inv_n
    var = s2 * inv_n - mean * mean                           # biased variance
    y = (y - mean) * (jax.lax.rsqrt(var + eps) * gamma_ref[...]) + beta_ref[...]

    # ---- layer 2: conv via rolled taps (no relayouts, halo via mask) ----
    w2 = w2_ref[...]                                         # (KH*KW, Cout, Cout) bf16
    masks = mask_ref[...]                                    # (KH*KW, BHW) f32
    acc = jnp.zeros((Cout, BHW), jnp.float32)
    t = 0
    for kh in range(KH):
        for kw in range(KW):
            shift_src = (kh - pad) * W + (kw - pad)          # flat source offset
            if shift_src == 0:
                tap = y
            else:
                # tap[:, p] = y[:, p + shift_src]  (np.roll semantics)
                tap = pltpu.roll(y, (-shift_src) % BHW, axis=1)
            tap = tap * masks[t:t + 1, :]                    # zero out-of-image halo
            acc = acc + jnp.dot(w2[t], tap.astype(jnp.bfloat16),
                                preferred_element_type=jnp.float32)
            t += 1

    o_ref[...] = act(acc + b2_ref[...])


def unet_conv_block(x_nchw, w1, b1, gamma, beta, w2, b2, *,
                    padding=1, use_leaky=False, eps=1e-5):
    """UNetConvBlock forward. Input/output in PyTorch NCHW layout (f32)."""
    B, Cin, H, W = x_nchw.shape
    Cout, _, KH, KW = w1.shape
    BHW = B * H * W

    # --- conv1 im2col patch matrix, built wrapper-side (channel-major layout) ---
    x_bf = x_nchw.astype(jnp.bfloat16)
    xp = jnp.pad(x_bf, ((0, 0), (0, 0), (padding, padding), (padding, padding)))
    cols = []
    for kh in range(KH):
        for kw in range(KW):
            sl = xp[:, :, kh:kh + H, kw:kw + W]                       # (B, Cin, H, W)
            cols.append(jnp.transpose(sl, (1, 0, 2, 3)).reshape(Cin, BHW))
    patches1 = jnp.concatenate(cols, axis=0)                          # (KH*KW*Cin, BHW)

    # --- weights in matmul-friendly layouts, bf16 for the MXU ---
    w1m = jnp.transpose(w1, (0, 2, 3, 1)).reshape(Cout, KH * KW * Cin)
    w1m = w1m.astype(jnp.bfloat16)
    w2m = jnp.transpose(w2, (2, 3, 0, 1)).reshape(KH * KW, Cout, Cout)
    w2m = w2m.astype(jnp.bfloat16)

    # --- per-tap validity masks for conv2 (in-kernel halo handling, no padded copy) ---
    lin = jnp.arange(BHW, dtype=jnp.int32)
    hh = (lin // W) % H
    ww = lin % W
    rows = []
    for kh in range(KH):
        for kw in range(KW):
            dh, dw = kh - padding, kw - padding
            rows.append((hh + dh >= 0) & (hh + dh < H) &
                        (ww + dw >= 0) & (ww + dw < W))
    mask = jnp.stack(rows, axis=0).astype(jnp.float32)                # (KH*KW, BHW)

    kern = functools.partial(_unet_block_kernel, W=W, KH=KH, KW=KW,
                             pad=padding, eps=eps, use_leaky=use_leaky)
    vmem = pl.BlockSpec(memory_space=pltpu.MemorySpace.VMEM)

    out = pl.pallas_call(
        kern,
        out_shape=jax.ShapeDtypeStruct((Cout, BHW), jnp.float32),
        in_specs=[vmem] * 8,
        out_specs=vmem,
    )(patches1, w1m,
      b1.reshape(Cout, 1).astype(jnp.float32),
      gamma.reshape(Cout, 1).astype(jnp.float32),
      beta.reshape(Cout, 1).astype(jnp.float32),
      w2m,
      b2.reshape(Cout, 1).astype(jnp.float32),
      mask)

    # (Cout, B*H*W) -> (B, Cout, H, W)
    return jnp.transpose(out.reshape(Cout, B, H, W), (1, 0, 2, 3)).astype(x_nchw.dtype)


def _reference_forward(x, w1, b1, gamma, beta, w2, b2, padding, eps=1e-5):
    """Pure-JAX mirror of the PyTorch forward (training-mode BN).

    Matmul inputs are rounded to bf16 exactly as the kernel does (bf16 MXU inputs,
    f32 accumulation), so the comparison isolates kernel logic from bf16 rounding.
    """
    f32 = jnp.float32

    def q(a):
        return a.astype(jnp.bfloat16).astype(f32)

    def conv(xx, ww, bb):
        y = jax.lax.conv_general_dilated(
            q(xx), q(ww), window_strides=(1, 1),
            padding=[(padding, padding), (padding, padding)],
            dimension_numbers=('NCHW', 'OIHW', 'NCHW'),
            precision=jax.lax.Precision.HIGHEST)
        return y + bb[None, :, None, None]

    y = jnp.maximum(conv(x, w1, b1), 0.0)
    mean = jnp.mean(y, axis=(0, 2, 3), keepdims=True)
    var = jnp.mean(jnp.square(y - mean), axis=(0, 2, 3), keepdims=True)
    y = (y - mean) * jax.lax.rsqrt(var + eps)
    y = y * gamma[None, :, None, None] + beta[None, :, None, None]
    z = jnp.maximum(conv(y, w2, b2), 0.0)
    return z


if __name__ == "__main__":
    B, Cin, Cout, H, W, K, P = 2, 4, 8, 16, 16, 3, 1

    key = jax.random.PRNGKey(0)
    k1, k2, k3, k4, k5, k6, k7 = jax.random.split(key, 7)

    x = jax.random.normal(k1, (B, Cin, H, W), jnp.float32)
    # Shapes match nn.Conv2d / nn.BatchNorm2d parameters.
    w1 = jax.random.normal(k2, (Cout, Cin, K, K), jnp.float32) * 0.1
    b1 = jax.random.normal(k3, (Cout,), jnp.float32) * 0.1
    gamma = 1.0 + 0.1 * jax.random.normal(k6, (Cout,), jnp.float32)  # BN weight
    beta = 0.1 * jax.random.normal(k7, (Cout,), jnp.float32)          # BN bias
    w2 = jax.random.normal(k4, (Cout, Cout, K, K), jnp.float32) * 0.1
    b2 = jax.random.normal(k5, (Cout,), jnp.float32) * 0.1

    out = unet_conv_block(x, w1, b1, gamma, beta, w2, b2, padding=P)
    out = jax.block_until_ready(out)

    ref = _reference_forward(x, w1, b1, gamma, beta, w2, b2, padding=P)
    assert out.shape == (B, Cout, H, W), out.shape
    max_err = float(jnp.max(jnp.abs(out - ref)))
    assert max_err < 5e-3, max_err

    print("KERNEL_OK")
</pallas_src>

<mosaic_0001>
module attributes {stable_mosaic.version = 11 : i64} {
  func.func @_unet_block_kernel(%arg0: memref<36x512xbf16, #tpu.memory_space<vmem>>, %arg1: memref<8x36xbf16, #tpu.memory_space<vmem>>, %arg2: memref<8x1xf32, #tpu.memory_space<vmem>>, %arg3: memref<8x1xf32, #tpu.memory_space<vmem>>, %arg4: memref<8x1xf32, #tpu.memory_space<vmem>>, %arg5: memref<9x8x8xbf16, #tpu.memory_space<vmem>>, %arg6: memref<8x1xf32, #tpu.memory_space<vmem>>, %arg7: memref<9x512xf32, #tpu.memory_space<vmem>>, %arg8: memref<8x512xf32, #tpu.memory_space<vmem>>) attributes {dimension_semantics = [], scalar_prefetch = 0 : i64, scratch_operands = 0 : i64, tpu.core_type = #tpu.core_type<tc>} {
    %c0 = arith.constant 0 : index
    %c0_0 = arith.constant 0 : index
    %0 = vector.load %arg1[%c0, %c0_0] : memref<8x36xbf16, #tpu.memory_space<vmem>>, vector<8x36xbf16>
    %c0_1 = arith.constant 0 : index
    %c0_2 = arith.constant 0 : index
    %1 = vector.load %arg0[%c0_1, %c0_2] : memref<36x512xbf16, #tpu.memory_space<vmem>>, vector<36x512xbf16>
    %cst = arith.constant dense<0.000000e+00> : vector<8x512xf32>
    %2 = tpu.matmul %0, %1, %cst {dimension_numbers = #tpu.dot_dimension_numbers<[1], [0], [0], [1], [0, 0, 1, 1], [], []>} : vector<8x36xbf16>, vector<36x512xbf16>, vector<8x512xf32> -> vector<8x512xf32>
    %c0_3 = arith.constant 0 : index
    %c0_4 = arith.constant 0 : index
    %3 = vector.load %arg2[%c0_3, %c0_4] : memref<8x1xf32, #tpu.memory_space<vmem>>, vector<8x1xf32>
    %4 = vector.broadcast %3 : vector<8x1xf32> to vector<8x512xf32>
    %5 = arith.addf %2, %4 : vector<8x512xf32>
    %cst_5 = arith.constant 0.000000e+00 : f32
    %6 = vector.broadcast %cst_5 : f32 to vector<8x512xf32>
    %7 = arith.maximumf %5, %6 : vector<8x512xf32>
    %cst_6 = arith.constant dense<0.000000e+00> : vector<8xf32>
    %8 = vector.multi_reduction <add>, %7, %cst_6 [1] : vector<8x512xf32> to vector<8xf32>
    %9 = vector.shape_cast %8 : vector<8xf32> to vector<8x1xf32>
    %10 = arith.mulf %7, %7 : vector<8x512xf32>
    %cst_7 = arith.constant dense<0.000000e+00> : vector<8xf32>
    %11 = vector.multi_reduction <add>, %10, %cst_7 [1] : vector<8x512xf32> to vector<8xf32>
    %12 = vector.shape_cast %11 : vector<8xf32> to vector<8x1xf32>
    %cst_8 = arith.constant 0.001953125 : f32
    %13 = vector.broadcast %cst_8 : f32 to vector<8x1xf32>
    %14 = arith.mulf %9, %13 : vector<8x1xf32>
    %cst_9 = arith.constant 0.001953125 : f32
    %15 = vector.broadcast %cst_9 : f32 to vector<8x1xf32>
    %16 = arith.mulf %12, %15 : vector<8x1xf32>
    %17 = arith.mulf %14, %14 : vector<8x1xf32>
    %18 = arith.subf %16, %17 : vector<8x1xf32>
    %19 = vector.broadcast %14 : vector<8x1xf32> to vector<8x512xf32>
    %20 = arith.subf %7, %19 : vector<8x512xf32>
    %cst_10 = arith.constant 9.99999974E-6 : f32
    %21 = vector.broadcast %cst_10 : f32 to vector<8x1xf32>
    %22 = arith.addf %18, %21 : vector<8x1xf32>
    %23 = math.rsqrt %22 : vector<8x1xf32>
    %c0_11 = arith.constant 0 : index
    %c0_12 = arith.constant 0 : index
    %24 = vector.load %arg3[%c0_11, %c0_12] : memref<8x1xf32, #tpu.memory_space<vmem>>, vector<8x1xf32>
    %25 = arith.mulf %23, %24 : vector<8x1xf32>
    %26 = vector.broadcast %25 : vector<8x1xf32> to vector<8x512xf32>
    %27 = arith.mulf %20, %26 : vector<8x512xf32>
    %c0_13 = arith.constant 0 : index
    %c0_14 = arith.constant 0 : index
    %28 = vector.load %arg4[%c0_13, %c0_14] : memref<8x1xf32, #tpu.memory_space<vmem>>, vector<8x1xf32>
    %29 = vector.broadcast %28 : vector<8x1xf32> to vector<8x512xf32>
    %30 = arith.addf %27, %29 : vector<8x512xf32>
    %c0_15 = arith.constant 0 : index
    %c0_16 = arith.constant 0 : index
    %c0_17 = arith.constant 0 : index
    %31 = vector.load %arg5[%c0_15, %c0_16, %c0_17] : memref<9x8x8xbf16, #tpu.memory_space<vmem>>, vector<9x8x8xbf16>
    %c0_18 = arith.constant 0 : index
    %c0_19 = arith.constant 0 : index
    %32 = vector.load %arg7[%c0_18, %c0_19] : memref<9x512xf32, #tpu.memory_space<vmem>>, vector<9x512xf32>
    %cst_20 = arith.constant 0.000000e+00 : f32
    %33 = vector.broadcast %cst_20 : f32 to vector<8x512xf32>
    %c17_i32 = arith.constant 17 : i32
    %34 = tpu.dynamic_rotate %30 by %c17_i32 dim 1 : vector<8x512xf32>, i32 -> vector<8x512xf32>
    %35 = vector.extract_strided_slice %32 {offsets = [0, 0], sizes = [1, 512], strides = [1, 1]} : vector<9x512xf32> to vector<1x512xf32>
    %36 = vector.broadcast %35 : vector<1x512xf32> to vector<8x512xf32>
    %37 = arith.mulf %34, %36 : vector<8x512xf32>
    %38 = vector.extract_strided_slice %31 {offsets = [0, 0, 0], sizes = [1, 8, 8], strides = [1, 1, 1]} : vector<9x8x8xbf16> to vector<1x8x8xbf16>
    %39 = vector.shape_cast %38 : vector<1x8x8xbf16> to vector<8x8xbf16>
    %40 = arith.truncf %37 : vector<8x512xf32> to vector<8x512xbf16>
    %cst_21 = arith.constant dense<0.000000e+00> : vector<8x512xf32>
    %41 = tpu.matmul %39, %40, %cst_21 {dimension_numbers = #tpu.dot_dimension_numbers<[1], [0], [0], [1], [0, 0, 1, 1], [], []>} : vector<8x8xbf16>, vector<8x512xbf16>, vector<8x512xf32> -> vector<8x512xf32>
    %42 = arith.addf %33, %41 : vector<8x512xf32>
    %c16_i32 = arith.constant 16 : i32
    %43 = tpu.dynamic_rotate %30 by %c16_i32 dim 1 : vector<8x512xf32>, i32 -> vector<8x512xf32>
    %44 = vector.extract_strided_slice %32 {offsets = [1, 0], sizes = [1, 512], strides = [1, 1]} : vector<9x512xf32> to vector<1x512xf32>
    %45 = vector.broadcast %44 : vector<1x512xf32> to vector<8x512xf32>
    %46 = arith.mulf %43, %45 : vector<8x512xf32>
    %47 = vector.extract_strided_slice %31 {offsets = [1, 0, 0], sizes = [1, 8, 8], strides = [1, 1, 1]} : vector<9x8x8xbf16> to vector<1x8x8xbf16>
    %48 = vector.shape_cast %47 : vector<1x8x8xbf16> to vector<8x8xbf16>
    %49 = arith.truncf %46 : vector<8x512xf32> to vector<8x512xbf16>
    %cst_22 = arith.constant dense<0.000000e+00> : vector<8x512xf32>
    %50 = tpu.matmul %48, %49, %cst_22 {dimension_numbers = #tpu.dot_dimension_numbers<[1], [0], [0], [1], [0, 0, 1, 1], [], []>} : vector<8x8xbf16>, vector<8x512xbf16>, vector<8x512xf32> -> vector<8x512xf32>
    %51 = arith.addf %42, %50 : vector<8x512xf32>
    %c15_i32 = arith.constant 15 : i32
    %52 = tpu.dynamic_rotate %30 by %c15_i32 dim 1 : vector<8x512xf32>, i32 -> vector<8x512xf32>
    %53 = vector.extract_strided_slice %32 {offsets = [2, 0], sizes = [1, 512], strides = [1, 1]} : vector<9x512xf32> to vector<1x512xf32>
    %54 = vector.broadcast %53 : vector<1x512xf32> to vector<8x512xf32>
    %55 = arith.mulf %52, %54 : vector<8x512xf32>
    %56 = vector.extract_strided_slice %31 {offsets = [2, 0, 0], sizes = [1, 8, 8], strides = [1, 1, 1]} : vector<9x8x8xbf16> to vector<1x8x8xbf16>
    %57 = vector.shape_cast %56 : vector<1x8x8xbf16> to vector<8x8xbf16>
    %58 = arith.truncf %55 : vector<8x512xf32> to vector<8x512xbf16>
    %cst_23 = arith.constant dense<0.000000e+00> : vector<8x512xf32>
    %59 = tpu.matmul %57, %58, %cst_23 {dimension_numbers = #tpu.dot_dimension_numbers<[1], [0], [0], [1], [0, 0, 1, 1], [], []>} : vector<8x8xbf16>, vector<8x512xbf16>, vector<8x512xf32> -> vector<8x512xf32>
    %60 = arith.addf %51, %59 : vector<8x512xf32>
    %c1_i32 = arith.constant 1 : i32
    %61 = tpu.dynamic_rotate %30 by %c1_i32 dim 1 : vector<8x512xf32>, i32 -> vector<8x512xf32>
    %62 = vector.extract_strided_slice %32 {offsets = [3, 0], sizes = [1, 512], strides = [1, 1]} : vector<9x512xf32> to vector<1x512xf32>
    %63 = vector.broadcast %62 : vector<1x512xf32> to vector<8x512xf32>
    %64 = arith.mulf %61, %63 : vector<8x512xf32>
    %65 = vector.extract_strided_slice %31 {offsets = [3, 0, 0], sizes = [1, 8, 8], strides = [1, 1, 1]} : vector<9x8x8xbf16> to vector<1x8x8xbf16>
    %66 = vector.shape_cast %65 : vector<1x8x8xbf16> to vector<8x8xbf16>
    %67 = arith.truncf %64 : vector<8x512xf32> to vector<8x512xbf16>
    %cst_24 = arith.constant dense<0.000000e+00> : vector<8x512xf32>
    %68 = tpu.matmul %66, %67, %cst_24 {dimension_numbers = #tpu.dot_dimension_numbers<[1], [0], [0], [1], [0, 0, 1, 1], [], []>} : vector<8x8xbf16>, vector<8x512xbf16>, vector<8x512xf32> -> vector<8x512xf32>
    %69 = arith.addf %60, %68 : vector<8x512xf32>
    %70 = vector.extract_strided_slice %32 {offsets = [4, 0], sizes = [1, 512], strides = [1, 1]} : vector<9x512xf32> to vector<1x512xf32>
    %71 = vector.broadcast %70 : vector<1x512xf32> to vector<8x512xf32>
    %72 = arith.mulf %30, %71 : vector<8x512xf32>
    %73 = vector.extract_strided_slice %31 {offsets = [4, 0, 0], sizes = [1, 8, 8], strides = [1, 1, 1]} : vector<9x8x8xbf16> to vector<1x8x8xbf16>
    %74 = vector.shape_cast %73 : vector<1x8x8xbf16> to vector<8x8xbf16>
    %75 = arith.truncf %72 : vector<8x512xf32> to vector<8x512xbf16>
    %cst_25 = arith.constant dense<0.000000e+00> : vector<8x512xf32>
    %76 = tpu.matmul %74, %75, %cst_25 {dimension_numbers = #tpu.dot_dimension_numbers<[1], [0], [0], [1], [0, 0, 1, 1], [], []>} : vector<8x8xbf16>, vector<8x512xbf16>, vector<8x512xf32> -> vector<8x512xf32>
    %77 = arith.addf %69, %76 : vector<8x512xf32>
    %c511_i32 = arith.constant 511 : i32
    %78 = tpu.dynamic_rotate %30 by %c511_i32 dim 1 : vector<8x512xf32>, i32 -> vector<8x512xf32>
    %79 = vector.extract_strided_slice %32 {offsets = [5, 0], sizes = [1, 512], strides = [1, 1]} : vector<9x512xf32> to vector<1x512xf32>
    %80 = vector.broadcast %79 : vector<1x512xf32> to vector<8x512xf32>
    %81 = arith.mulf %78, %80 : vector<8x512xf32>
    %82 = vector.extract_strided_slice %31 {offsets = [5, 0, 0], sizes = [1, 8, 8], strides = [1, 1, 1]} : vector<9x8x8xbf16> to vector<1x8x8xbf16>
    %83 = vector.shape_cast %82 : vector<1x8x8xbf16> to vector<8x8xbf16>
    %84 = arith.truncf %81 : vector<8x512xf32> to vector<8x512xbf16>
    %cst_26 = arith.constant dense<0.000000e+00> : vector<8x512xf32>
    %85 = tpu.matmul %83, %84, %cst_26 {dimension_numbers = #tpu.dot_dimension_numbers<[1], [0], [0], [1], [0, 0, 1, 1], [], []>} : vector<8x8xbf16>, vector<8x512xbf16>, vector<8x512xf32> -> vector<8x512xf32>
    %86 = arith.addf %77, %85 : vector<8x512xf32>
    %c497_i32 = arith.constant 497 : i32
    %87 = tpu.dynamic_rotate %30 by %c497_i32 dim 1 : vector<8x512xf32>, i32 -> vector<8x512xf32>
    %88 = vector.extract_strided_slice %32 {offsets = [6, 0], sizes = [1, 512], strides = [1, 1]} : vector<9x512xf32> to vector<1x512xf32>
    %89 = vector.broadcast %88 : vector<1x512xf32> to vector<8x512xf32>
    %90 = arith.mulf %87, %89 : vector<8x512xf32>
    %91 = vector.extract_strided_slice %31 {offsets = [6, 0, 0], sizes = [1, 8, 8], strides = [1, 1, 1]} : vector<9x8x8xbf16> to vector<1x8x8xbf16>
    %92 = vector.shape_cast %91 : vector<1x8x8xbf16> to vector<8x8xbf16>
    %93 = arith.truncf %90 : vector<8x512xf32> to vector<8x512xbf16>
    %cst_27 = arith.constant dense<0.000000e+00> : vector<8x512xf32>
    %94 = tpu.matmul %92, %93, %cst_27 {dimension_numbers = #tpu.dot_dimension_numbers<[1], [0], [0], [1], [0, 0, 1, 1], [], []>} : vector<8x8xbf16>, vector<8x512xbf16>, vector<8x512xf32> -> vector<8x512xf32>
    %95 = arith.addf %86, %94 : vector<8x512xf32>
    %c496_i32 = arith.constant 496 : i32
    %96 = tpu.dynamic_rotate %30 by %c496_i32 dim 1 : vector<8x512xf32>, i32 -> vector<8x512xf32>
    %97 = vector.extract_strided_slice %32 {offsets = [7, 0], sizes = [1, 512], strides = [1, 1]} : vector<9x512xf32> to vector<1x512xf32>
    %98 = vector.broadcast %97 : vector<1x512xf32> to vector<8x512xf32>
    %99 = arith.mulf %96, %98 : vector<8x512xf32>
    %100 = vector.extract_strided_slice %31 {offsets = [7, 0, 0], sizes = [1, 8, 8], strides = [1, 1, 1]} : vector<9x8x8xbf16> to vector<1x8x8xbf16>
    %101 = vector.shape_cast %100 : vector<1x8x8xbf16> to vector<8x8xbf16>
    %102 = arith.truncf %99 : vector<8x512xf32> to vector<8x512xbf16>
    %cst_28 = arith.constant dense<0.000000e+00> : vector<8x512xf32>
    %103 = tpu.matmul %101, %102, %cst_28 {dimension_numbers = #tpu.dot_dimension_numbers<[1], [0], [0], [1], [0, 0, 1, 1], [], []>} : vector<8x8xbf16>, vector<8x512xbf16>, vector<8x512xf32> -> vector<8x512xf32>
    %104 = arith.addf %95, %103 : vector<8x512xf32>
    %c495_i32 = arith.constant 495 : i32
    %105 = tpu.dynamic_rotate %30 by %c495_i32 dim 1 : vector<8x512xf32>, i32 -> vector<8x512xf32>
    %106 = vector.extract_strided_slice %32 {offsets = [8, 0], sizes = [1, 512], strides = [1, 1]} : vector<9x512xf32> to vector<1x512xf32>
    %107 = vector.broadcast %106 : vector<1x512xf32> to vector<8x512xf32>
    %108 = arith.mulf %105, %107 : vector<8x512xf32>
    %109 = vector.extract_strided_slice %31 {offsets = [8, 0, 0], sizes = [1, 8, 8], strides = [1, 1, 1]} : vector<9x8x8xbf16> to vector<1x8x8xbf16>
    %110 = vector.shape_cast %109 : vector<1x8x8xbf16> to vector<8x8xbf16>
    %111 = arith.truncf %108 : vector<8x512xf32> to vector<8x512xbf16>
    %cst_29 = arith.constant dense<0.000000e+00> : vector<8x512xf32>
    %112 = tpu.matmul %110, %111, %cst_29 {dimension_numbers = #tpu.dot_dimension_numbers<[1], [0], [0], [1], [0, 0, 1, 1], [], []>} : vector<8x8xbf16>, vector<8x512xbf16>, vector<8x512xf32> -> vector<8x512xf32>
    %113 = arith.addf %104, %112 : vector<8x512xf32>
    %c0_30 = arith.constant 0 : index
    %c0_31 = arith.constant 0 : index
    %114 = vector.load %arg6[%c0_30, %c0_31] : memref<8x1xf32, #tpu.memory_space<vmem>>, vector<8x1xf32>
    %115 = vector.broadcast %114 : vector<8x1xf32> to vector<8x512xf32>
    %116 = arith.addf %113, %115 : vector<8x512xf32>
    %cst_32 = arith.constant 0.000000e+00 : f32
    %117 = vector.broadcast %cst_32 : f32 to vector<8x512xf32>
    %118 = arith.maximumf %116, %117 : vector<8x512xf32>
    %c0_33 = arith.constant 0 : index
    %c0_34 = arith.constant 0 : index
    %119 = vector.load %arg8[%c0_33, %c0_34] : memref<8x512xf32, #tpu.memory_space<vmem>>, vector<8x512xf32>
    tpu.vector_store %arg8[%c0_33, %c0_34], %118 {strides = array<i32>} : memref<8x512xf32, #tpu.memory_space<vmem>>, vector<8x512xf32>,
    return
  }
}

</mosaic_0001>

<llo_original>
// kernel: tpu_custom_call.1
$region0: #{tpu_custom_call.1}
  #allocation0 [shape = 'u32[]', space=smem, size = 0x4, offset = 0x4, fixed_abs, tag = 'smem constant byte address 0x4 - core index']
  #allocation1 [shape = 'u32[144,128]{1,0:T(1,128)}', space=vmem, size = 0x12000, scoped, tag = 'internal scratch']
  %s0 = inlined_call_operand.vmem [shape: bf16[36,512], index: 0, kind: input, shape index: {}]
  %s1 = inlined_call_operand.vmem [shape: bf16[8,36], index: 1, kind: input, shape index: {}]
  %s2 = inlined_call_operand.vmem [shape: f32[8,1], index: 2, kind: input, shape index: {}]
  %s3 = inlined_call_operand.vmem [shape: f32[8,1], index: 3, kind: input, shape index: {}]
  %s4 = inlined_call_operand.vmem [shape: f32[8,1], index: 4, kind: input, shape index: {}]
  %s5 = inlined_call_operand.vmem [shape: bf16[9,8,8], index: 5, kind: input, shape index: {}]
  %s6 = inlined_call_operand.vmem [shape: f32[8,1], index: 6, kind: input, shape index: {}]
  %s7 = inlined_call_operand.hbm [shape: f32[9,512], index: 7, kind: input, shape index: {}]
  %s8 = inlined_call_operand.hbm [shape: f32[8,512], index: 8, kind: output, shape index: {}]
  %s9 = sld [smem:[#allocation0]]
  $region46: #{tpu_custom_call.1} parent=0
    _
  %s11 = ssub.s32 1, %s9
  %s12 = scalar_select 0, %s11, %s9
  $region1: #{tpu_custom_call.1} parent=0
    #allocation2 [shape = 'u8[32768]{0}', space=vmem, size = 0x8000, scoped, tag = 'input window, operand 7, single buffered']
    #allocation3 [shape = 's32[1]{0}', space=sflag, size = 0x4, scoped, tag = 'scoped memory for tpu_custom_call.1']
    #allocation4 [shape = 's32[1]{0}', space=sflag, size = 0x4, scoped, tag = 'scoped memory for tpu_custom_call.1']
    #allocation5 [shape = 'u8[16384]{0}', space=vmem, size = 0x4000, scoped, tag = 'output window, operand 0, single buffered']
    %13 = vsyncpa [#allocation3], 0
    %14 = vsyncpa [#allocation4], 0
    // Predicated region
    $region2: #{tpu_custom_call.1} parent=1 // pred_check
      _
    $region3: #{tpu_custom_call.1} parent=1 // pred_check_branch
      %16 = sbr.rel (0) target = $region5
    $region4: #{tpu_custom_call.1} parent=1 // pred_region
      _
    $region5: #{tpu_custom_call.1} parent=1 // pred_fallthru
      _
    // Predicated region
    $region6: #{tpu_custom_call.1} parent=1 // pred_check
      _
    $region7: #{tpu_custom_call.1} parent=1 // pred_check_branch
      %18 = sbr.rel (0) target = $region9
    $region8: #{tpu_custom_call.1} parent=1 // pred_region
      _
    $region9: #{tpu_custom_call.1} parent=1 // pred_fallthru
      _
    // Predicated region
    $region10: #{tpu_custom_call.1} parent=1 // pred_check
      _
    $region11: #{tpu_custom_call.1} parent=1 // pred_check_branch
      %20 = sbr.rel (0) target = $region13
    $region12: #{tpu_custom_call.1} parent=1 // pred_region
      _
    $region13: #{tpu_custom_call.1} parent=1 // pred_fallthru
      _
    // Predicated region
    $region14: #{tpu_custom_call.1} parent=1 // pred_check
      _
    $region15: #{tpu_custom_call.1} parent=1 // pred_check_branch
      %22 = sbr.rel (0) target = $region17
    $region16: #{tpu_custom_call.1} parent=1 // pred_region
      _
    $region17: #{tpu_custom_call.1} parent=1 // pred_fallthru
      _
    // Predicated region
    $region18: #{tpu_custom_call.1} parent=1 // pred_check
      _
    $region19: #{tpu_custom_call.1} parent=1 // pred_check_branch
      %24 = sbr.rel (0) target = $region21
    $region20: #{tpu_custom_call.1} parent=1 // pred_region
      _
    $region21: #{tpu_custom_call.1} parent=1 // pred_fallthru
      _
    // Predicated region
    $region22: #{tpu_custom_call.1} parent=1 // pred_check
      _
    $region23: #{tpu_custom_call.1} parent=1 // pred_check_branch
      %26 = sbr.rel (0) target = $region25
    $region24: #{tpu_custom_call.1} parent=1 // pred_region
      _
    $region25: #{tpu_custom_call.1} parent=1 // pred_fallthru
      _
    // Predicated region
    $region26: #{tpu_custom_call.1} parent=1 // pred_check
      _
    $region27: #{tpu_custom_call.1} parent=1 // pred_check_branch
      %28 = sbr.rel (0) target = $region29
    $region28: #{tpu_custom_call.1} parent=1 // pred_region
      _
    $region29: #{tpu_custom_call.1} parent=1 // pred_fallthru
      _
    // Predicated region
    $region30: #{tpu_custom_call.1} parent=1 // pred_check
      _
    $region31: #{tpu_custom_call.1} parent=1 // pred_check_branch
      %30 = sbr.rel (0) target = $region33
    $region32: #{tpu_custom_call.1} parent=1 // pred_region
      %s32 = ssub.s32 1024, 1024
      %33 = vsyncadd [#allocation3], %s32
      %s34 = sshll.u32 [#allocation2], 4
      %s35 = int_to_ptr.vmem [resolvable:$true] %s34
      %40 = dma.hbm_to_vmem [thread:$0]  %s7, 1024, %s35, [#allocation3], 512, 512, 32
    $region33: #{tpu_custom_call.1} parent=1 // pred_fallthru
      _
    // Predicated region
    $region34: #{tpu_custom_call.1} parent=1 // pred_check
      _
    $region35: #{tpu_custom_call.1} parent=1 // pred_check_branch
      %42 = sbr.rel (0) target = $region37
    $region36: #{tpu_custom_call.1} parent=1 // pred_region
      %43 = dma.done [#allocation3], 1024
    $region37: #{tpu_custom_call.1} parent=1 // pred_fallthru
      _
    %v45 = vld [vmem:[%s1] sm:$0xf]
    %v46 = vld [vmem:[%s0] sm:$0xff]
    %v47 = vld [vmem:[%s0 + $0x8] sm:$0xff]
    %v48 = vld [vmem:[%s0 + $0x10] sm:$0xff]
    %v49 = vld [vmem:[%s0 + $0x18] sm:$0xff]
    %v50 = vld [vmem:[%s0 + $0x20] sm:$0xff]
    %v51 = vld [vmem:[%s0 + $0x28] sm:$0xff]
    %v52 = vld [vmem:[%s0 + $0x30] sm:$0xff]
    %v53 = vld [vmem:[%s0 + $0x38] sm:$0xff]
    %v54 = vld [vmem:[%s0 + $0x40] sm:$0x33]
    %v55 = vld [vmem:[%s0 + $0x48] sm:$0x33]
    %v56 = vld [vmem:[%s2] sm:$0xff]
    %58 = vset.pattern.permute.xlu0 0
    %59 = vperm.xlu0 %58, %v56
    %v60 = vpop.permute.xlu0 %59
    %v72 = vunpack.c.l.b16 %v46
    %v73 = vunpack.c.h.b16 %v46
    %v74 = vunpack.c.l.b16 %v47
    %v75 = vunpack.c.h.b16 %v47
    %v76 = vunpack.c.l.b16 %v48
    %v77 = vunpack.c.h.b16 %v48
    %v78 = vunpack.c.l.b16 %v49
    %v79 = vunpack.c.h.b16 %v49
    %v80 = vunpack.c.l.b16 %v50
    %v81 = vunpack.c.h.b16 %v50
    %v82 = vunpack.c.l.b16 %v51
    %v83 = vunpack.c.h.b16 %v51
    %v84 = vunpack.c.l.b16 %v52
    %v85 = vunpack.c.h.b16 %v52
    %v86 = vunpack.c.l.b16 %v53
    %v87 = vunpack.c.h.b16 %v53
    %v88 = vunpack.c.l.b16 %v54
    %v89 = vunpack.c.h.b16 %v54
    %v90 = vunpack.c.l.b16 %v55
    %v91 = vunpack.c.h.b16 %v55
    %v92 = vpack.c.b16 %v76, %v72
    %v93 = vpack.c.b16 %v77, %v73
    %v94 = vpack.c.b16 %v78, %v74
    %v95 = vpack.c.b16 %v79, %v75
    %v96 = vpack.c.b16 %v84, %v80
    %v97 = vpack.c.b16 %v85, %v81
    %v98 = vpack.c.b16 %v86, %v82
    %v99 = vpack.c.b16 %v87, %v83
    %v100 = vpack.c.b16 %v88, %v88
    %v101 = vpack.c.b16 %v89, %v89
    %v102 = vpack.c.b16 %v90, %v90
    %v103 = vpack.c.b16 %v91, %v91
    %vm112 = vcmask 293888
    %v114 = vsel %vm112, %v45, 0
    %vm116 = vcmask 1041408
    %v118 = vsel %vm116, %v100, 0
    %v121 = vsel %vm116, %v101, 0
    %v124 = vsel %vm116, %v102, 0
    %v127 = vsel %vm116, %v103, 0
    %129 = vmatprep.subr.bf16.mxu0 %v93
    %130 = vmatpush1.bf16.msra.mxu0 %v92
    %131 = vmatprep.subr.bf16.mxu0 %v97
    %132 = vmatpush1.bf16.msra.mxu0 %v96
    %133 = vmatprep.subr.bf16.mxu0 %v121
    %134 = vmatpush1.bf16.msra.mxu0 %v118
    %135 = vmatprep.subr.bf16.mxu0 0
    %136 = vmatpush1.bf16.msra.mxu0 0
    %137 = vmatprep.subr.bf16.mxu0 0
    %138 = vmatpush1.bf16.msra.mxu0 0
    %139 = vmatprep.subr.bf16.mxu0 0
    %140 = vmatpush1.bf16.msra.mxu0 0
    %141 = vmatprep.subr.bf16.mxu0 0
    %142 = vmatpush1.bf16.msra.mxu0 0
    %143 = vmatprep.subr.bf16.mxu0 0
    %144 = vmatpush1.bf16.msra.mxu0 0
    %145 = vmatprep.subr.bf16.mxu0 0
    %146 = vmatpush1.bf16.msra.mxu0 0
    %147 = vmatprep.subr.bf16.mxu0 0
    %148 = vmatpush1.bf16.msra.mxu0 0
    %149 = vmatprep.subr.bf16.mxu0 0
    %150 = vmatpush1.bf16.msra.mxu0 0
    %151 = vmatprep.subr.bf16.mxu0 0
    %152 = vmatpush1.bf16.msra.mxu0 0
    %153 = vmatprep.subr.bf16.mxu0 0
    %154 = vmatpush1.bf16.msra.mxu0 0
    %155 = vmatprep.subr.bf16.mxu0 0
    %156 = vmatpush1.bf16.msra.mxu0 0
    %157 = vmatprep.subr.bf16.mxu0 0
    %158 = vmatpush1.bf16.msra.mxu0 0
    %159 = vmatprep.subr.bf16.mxu0 0
    %160 = vmatpush1.bf16.msra.mxu0 0
    %161 = vmatprep.mubr.bf16.mxu0 0
    %162 = vmatmul.mubr.bf16.gmra.mrb[0].mxu0 %v114
    %v163 = vpop.f32.mrb[0].mxu0
    %v164 = vadd.f32 %v60, %v163
    %v165 = vpop.f32.mrb[0].mxu0
    %v166 = vadd.f32 %v60, %v165
    %v167 = vpop.f32.mrb[0].mxu0
    %v168 = vpop.f32.mrb[0].mxu0
    %169 = vdwg.mxu0
    %170 = vmatprep.subr.bf16.mxu0 %v95
    %171 = vmatpush1.bf16.msra.mxu0 %v94
    %172 = vmatprep.subr.bf16.mxu0 %v99
    %173 = vmatpush1.bf16.msra.mxu0 %v98
    %174 = vmatprep.subr.bf16.mxu0 %v127
    %175 = vmatpush1.bf16.msra.mxu0 %v124
    %176 = vmatprep.subr.bf16.mxu0 0
    %177 = vmatpush1.bf16.msra.mxu0 0
    %178 = vmatprep.subr.bf16.mxu0 0
    %179 = vmatpush1.bf16.msra.mxu0 0
    %180 = vmatprep.subr.bf16.mxu0 0
    %181 = vmatpush1.bf16.msra.mxu0 0
    %182 = vmatprep.subr.bf16.mxu0 0
    %183 = vmatpush1.bf16.msra.mxu0 0
    %184 = vmatprep.subr.bf16.mxu0 0
    %185 = vmatpush1.bf16.msra.mxu0 0
    %186 = vmatprep.subr.bf16.mxu0 0
    %187 = vmatpush1.bf16.msra.mxu0 0
    %188 = vmatprep.subr.bf16.mxu0 0
    %189 = vmatpush1.bf16.msra.mxu0 0
    %190 = vmatprep.subr.bf16.mxu0 0
    %191 = vmatpush1.bf16.msra.mxu0 0
    %192 = vmatprep.subr.bf16.mxu0 0
    %193 = vmatpush1.bf16.msra.mxu0 0
    %194 = vmatprep.subr.bf16.mxu0 0
    %195 = vmatpush1.bf16.msra.mxu0 0
    %196 = vmatprep.subr.bf16.mxu0 0
    %197 = vmatpush1.bf16.msra.mxu0 0
    %198 = vmatprep.subr.bf16.mxu0 0
    %199 = vmatpush1.bf16.msra.mxu0 0
    %200 = vmatprep.subr.bf16.mxu0 0
    %201 = vmatpush1.bf16.msra.mxu0 0
    %202 = vmatprep.mubr.bf16.mxu0 0
    %203 = vmatmul.mubr.bf16.gmra.mrb[0].mxu0 %v114
    %v204 = vpop.f32.mrb[0].mxu0
    %v205 = vadd.f32 %v60, %v204
    %v206 = vpop.f32.mrb[0].mxu0
    %v207 = vadd.f32 %v60, %v206
    %v208 = vpop.f32.mrb[0].mxu0
    %v209 = vpop.f32.mrb[0].mxu0
    %210 = vdwg.mxu0
    %v211 = vmax.f32 %v164, 0.0
    %v212 = vmax.f32 %v166, 0.0
    %v213 = vmax.f32 %v205, 0.0
    %v214 = vmax.f32 %v207, 0.0
    %v215 = vadd.f32 %v211, %v212
    %v216 = vadd.f32 %v215, %v213
    %v217 = vadd.f32 %v216, %v214
    %218 = vadd.xlane.f32.xlu0 %v217
    %v219 = vpop.xlane.xlu0 %218
    %v220 = vmul.f32 %v211, %v211
    %v221 = vmul.f32 %v212, %v212
    %v222 = vmul.f32 %v213, %v213
    %v223 = vmul.f32 %v214, %v214
    %v224 = vadd.f32 %v220, %v221
    %v225 = vadd.f32 %v224, %v222
    %v226 = vadd.f32 %v225, %v223
    %227 = vadd.xlane.f32.xlu0 %v226
    %v228 = vpop.xlane.xlu0 %227
    %v229 = vmul.f32 %v219, 0.001953125
    %v230 = vmul.f32 %v228, 0.001953125
    %v231 = vmul.f32 %v229, %v229
    %v232 = vsub.f32 %v230, %v231
    %v233 = vsub.f32 %v211, %v229
    %v234 = vsub.f32 %v212, %v229
    %v235 = vsub.f32 %v213, %v229
    %v236 = vsub.f32 %v214, %v229
    %v237 = vadd.f32 %v232, 1e-05
    %v238 = vrsqrt.pop %v237
    %v239 = vld [vmem:[%s3] sm:$0xff]
    %v240 = vmul.f32 %v238, %v239
    %242 = vset.pattern.permute.xlu0 0
    %243 = vperm.xlu0 %242, %v240
    %v244 = vpop.permute.xlu0 %243
    %v246 = vmul.f32 %v233, %v244
    %v247 = vmul.f32 %v234, %v244
    %v248 = vmul.f32 %v235, %v244
    %v249 = vmul.f32 %v236, %v244
    %v250 = vld [vmem:[%s4] sm:$0xff]
    %252 = vset.pattern.permute.xlu0 0
    %253 = vperm.xlu0 %252, %v250
    %v254 = vpop.permute.xlu0 %253
    %v256 = vadd.f32 %v246, %v254
    %v257 = vadd.f32 %v247, %v254
    %v258 = vadd.f32 %v248, %v254
    %v259 = vadd.f32 %v249, %v254
    %v260 = vld [vmem:[%s5] sm:$0xf]
    %v261 = vld [vmem:[%s5 + $0x4] sm:$0xf]
    %v262 = vld [vmem:[%s5 + $0x8] sm:$0xf]
    %v263 = vld [vmem:[%s5 + $0xc] sm:$0xf]
    %v264 = vld [vmem:[%s5 + $0x10] sm:$0xf]
    %v265 = vld [vmem:[%s5 + $0x14] sm:$0xf]
    %v266 = vld [vmem:[%s5 + $0x18] sm:$0xf]
    %v267 = vld [vmem:[%s5 + $0x1c] sm:$0xf]
    %v268 = vld [vmem:[%s5 + $0x20] sm:$0xf]
    %v269 = vld [vmem:[#allocation2] sm:$0xff]
    %v270 = vld [vmem:[#allocation2 + $0x8] sm:$0xff]
    %v271 = vld [vmem:[#allocation2 + $0x10] sm:$0xff]
    %v272 = vld [vmem:[#allocation2 + $0x18] sm:$0xff]
    %v273 = vld [vmem:[#allocation2 + $0x20] sm:$0x1]
    %v274 = vld [vmem:[#allocation2 + $0x28] sm:$0x1]
    %v275 = vld [vmem:[#allocation2 + $0x30] sm:$0x1]
    %v276 = vld [vmem:[#allocation2 + $0x38] sm:$0x1]
    %277 = vrot.lane.b32.xlu0 %v256, 17
    %v278 = vpop.permute.xlu0 %277
    %279 = vrot.lane.b32.xlu0 %v257, 17
    %v280 = vpop.permute.xlu0 %279
    %281 = vrot.lane.b32.xlu0 %v258, 17
    %v282 = vpop.permute.xlu0 %281
    %283 = vrot.lane.b32.xlu0 %v259, 17
    %v284 = vpop.permute.xlu0 %283
    %v285 = vlaneseq
    %v286 = vand.u32 %v285, 127
    %vm287 = vcmp.lt.s32.totalorder %v286, 17
    %v288 = vsel %vm287, %v282, %v284
    %v289 = vsel %vm287, %v280, %v282
    %v290 = vsel %vm287, %v278, %v280
    %v291 = vsel %vm287, %v284, %v278
    %v292 = vlaneseq
    %v293 = vshrl.u32 %v292, 7
    %v294 = vsub.s32 0, %v293
    %v295 = vrot.slane %v269, %v294
    %v296 = vlaneseq
    %v297 = vshrl.u32 %v296, 7
    %v298 = vsub.s32 0, %v297
    %v299 = vrot.slane %v270, %v298
    %v300 = vlaneseq
    %v301 = vshrl.u32 %v300, 7
    %v302 = vsub.s32 0, %v301
    %v303 = vrot.slane %v271, %v302
    %v304 = vlaneseq
    %v305 = vshrl.u32 %v304, 7
    %v306 = vsub.s32 0, %v305
    %v307 = vrot.slane %v272, %v306
    %v308 = vmul.f32 %v291, %v295
    %v309 = vmul.f32 %v290, %v299
    %v310 = vmul.f32 %v289, %v303
    %v311 = vmul.f32 %v288, %v307
    %v312 = vpack.c.bf16 %v308, %v308
    %v313 = vpack.c.bf16 %v309, %v309
    %v314 = vpack.c.bf16 %v310, %v310
    %v315 = vpack.c.bf16 %v311, %v311
    %316 = vrot.lane.b32.xlu0 %v256, 16
    %v317 = vpop.permute.xlu0 %316
    %318 = vrot.lane.b32.xlu0 %v257, 16
    %v319 = vpop.permute.xlu0 %318
    %320 = vrot.lane.b32.xlu0 %v258, 16
    %v321 = vpop.permute.xlu0 %320
    %322 = vrot.lane.b32.xlu0 %v259, 16
    %v323 = vpop.permute.xlu0 %322
    %vm324 = vcmp.lt.s32.totalorder %v286, 16
    %v325 = vsel %vm324, %v321, %v323
    %v326 = vsel %vm324, %v319, %v321
    %v327 = vsel %vm324, %v317, %v319
    %v328 = vsel %vm324, %v323, %v317
    %v329 = vlaneseq
    %v330 = vshrl.u32 %v329, 7
    %v331 = vsub.s32 1, %v330
    %v332 = vrot.slane %v269, %v331
    %v333 = vlaneseq
    %v334 = vshrl.u32 %v333, 7
    %v335 = vsub.s32 1, %v334
    %v336 = vrot.slane %v270, %v335
    %v337 = vlaneseq
    %v338 = vshrl.u32 %v337, 7
    %v339 = vsub.s32 1, %v338
    %v340 = vrot.slane %v271, %v339
    %v341 = vlaneseq
    %v342 = vshrl.u32 %v341, 7
    %v343 = vsub.s32 1, %v342
    %v344 = vrot.slane %v272, %v343
    %v345 = vmul.f32 %v328, %v332
    %v346 = vmul.f32 %v327, %v336
    %v347 = vmul.f32 %v326, %v340
    %v348 = vmul.f32 %v325, %v344
    %v349 = vpack.c.bf16 %v345, %v345
    %v350 = vpack.c.bf16 %v346, %v346
    %v351 = vpack.c.bf16 %v347, %v347
    %v352 = vpack.c.bf16 %v348, %v348
    %vm353 = vcmask 64512
    %v355 = vsel %vm353, %v261, 0
    %vm357 = vcmask 1043456
    %v359 = vsel %vm357, %v349, 0
    %v362 = vsel %vm357, %v350, 0
    %v365 = vsel %vm357, %v351, 0
    %v368 = vsel %vm357, %v352, 0
    %370 = vmatprep.subr.bf16.mxu0 %v362
    %371 = vmatpush1.bf16.msra.mxu0 %v359
    %372 = vmatprep.subr.bf16.mxu0 0
    %373 = vmatpush1.bf16.msra.mxu0 0
    %374 = vmatprep.subr.bf16.mxu0 0
    %375 = vmatpush1.bf16.msra.mxu0 0
    %376 = vmatprep.subr.bf16.mxu0 0
    %377 = vmatpush1.bf16.msra.mxu0 0
    %378 = vmatprep.subr.bf16.mxu0 0
    %379 = vmatpush1.bf16.msra.mxu0 0
    %380 = vmatprep.subr.bf16.mxu0 0
    %381 = vmatpush1.bf16.msra.mxu0 0
    %382 = vmatprep.subr.bf16.mxu0 0
    %383 = vmatpush1.bf16.msra.mxu0 0
    %384 = vmatprep.subr.bf16.mxu0 0
    %385 = vmatpush1.bf16.msra.mxu0 0
    %386 = vmatprep.subr.bf16.mxu0 0
    %387 = vmatpush1.bf16.msra.mxu0 0
    %388 = vmatprep.subr.bf16.mxu0 0
    %389 = vmatpush1.bf16.msra.mxu0 0
    %390 = vmatprep.subr.bf16.mxu0 0
    %391 = vmatpush1.bf16.msra.mxu0 0
    %392 = vmatprep.subr.bf16.mxu0 0
    %393 = vmatpush1.bf16.msra.mxu0 0
    %394 = vmatprep.subr.bf16.mxu0 0
    %395 = vmatpush1.bf16.msra.mxu0 0
    %396 = vmatprep.subr.bf16.mxu0 0
    %397 = vmatpush1.bf16.msra.mxu0 0
    %398 = vmatprep.subr.bf16.mxu0 0
    %399 = vmatpush1.bf16.msra.mxu0 0
    %400 = vmatprep.subr.bf16.mxu0 0
    %401 = vmatpush1.bf16.msra.mxu0 0
    %402 = vmatprep.mubr.bf16.mxu0 0
    %403 = vmatmul.mubr.bf16.gmra.mrb[0].mxu0 %v355
    %v404 = vpop.f32.mrb[0].mxu0
    %v405 = vadd.f32 0.0, %v404
    %v406 = vpop.f32.mrb[0].mxu0
    %v407 = vadd.f32 0.0, %v406
    %v408 = vpop.f32.mrb[0].mxu0
    %v409 = vpop.f32.mrb[0].mxu0
    %410 = vdwg.mxu0
    %411 = vmatprep.subr.bf16.mxu0 %v368
    %412 = vmatpush1.bf16.msra.mxu0 %v365
    %413 = vmatprep.subr.bf16.mxu0 0
    %414 = vmatpush1.bf16.msra.mxu0 0
    %415 = vmatprep.subr.bf16.mxu0 0
    %416 = vmatpush1.bf16.msra.mxu0 0
    %417 = vmatprep.subr.bf16.mxu0 0
    %418 = vmatpush1.bf16.msra.mxu0 0
    %419 = vmatprep.subr.bf16.mxu0 0
    %420 = vmatpush1.bf16.msra.mxu0 0
    %421 = vmatprep.subr.bf16.mxu0 0
    %422 = vmatpush1.bf16.msra.mxu0 0
    %423 = vmatprep.subr.bf16.mxu0 0
    %424 = vmatpush1.bf16.msra.mxu0 0
    %425 = vmatprep.subr.bf16.mxu0 0
    %426 = vmatpush1.bf16.msra.mxu0 0
    %427 = vmatprep.subr.bf16.mxu0 0
    %428 = vmatpush1.bf16.msra.mxu0 0
    %429 = vmatprep.subr.bf16.mxu0 0
    %430 = vmatpush1.bf16.msra.mxu0 0
    %431 = vmatprep.subr.bf16.mxu0 0
    %432 = vmatpush1.bf16.msra.mxu0 0
    %433 = vmatprep.subr.bf16.mxu0 0
    %434 = vmatpush1.bf16.msra.mxu0 0
    %435 = vmatprep.subr.bf16.mxu0 0
    %436 = vmatpush1.bf16.msra.mxu0 0
    %437 = vmatprep.subr.bf16.mxu0 0
    %438 = vmatpush1.bf16.msra.mxu0 0
    %439 = vmatprep.subr.bf16.mxu0 0
    %440 = vmatpush1.bf16.msra.mxu0 0
    %441 = vmatprep.subr.bf16.mxu0 0
    %442 = vmatpush1.bf16.msra.mxu0 0
    %443 = vmatprep.mubr.bf16.mxu0 0
    %444 = vmatmul.mubr.bf16.gmra.mrb[0].mxu0 %v355
    %v445 = vpop.f32.mrb[0].mxu0
    %v446 = vadd.f32 0.0, %v445
    %v447 = vpop.f32.mrb[0].mxu0
    %v448 = vadd.f32 0.0, %v447
    %v449 = vpop.f32.mrb[0].mxu0
    %v450 = vpop.f32.mrb[0].mxu0
    %451 = vdwg.mxu0
    %v453 = vsel %vm353, %v260, 0
    %v456 = vsel %vm357, %v312, 0
    %v459 = vsel %vm357, %v313, 0
    %v462 = vsel %vm357, %v314, 0
    %v465 = vsel %vm357, %v315, 0
    %467 = vmatprep.subr.bf16.mxu0 %v459
    %468 = vmatpush1.bf16.msra.mxu0 %v456
    %469 = vmatprep.subr.bf16.mxu0 0
    %470 = vmatpush1.bf16.msra.mxu0 0
    %471 = vmatprep.subr.bf16.mxu0 0
    %472 = vmatpush1.bf16.msra.mxu0 0
    %473 = vmatprep.subr.bf16.mxu0 0
    %474 = vmatpush1.bf16.msra.mxu0 0
    %475 = vmatprep.subr.bf16.mxu0 0
    %476 = vmatpush1.bf16.msra.mxu0 0
    %477 = vmatprep.subr.bf16.mxu0 0
    %478 = vmatpush1.bf16.msra.mxu0 0
    %479 = vmatprep.subr.bf16.mxu0 0
    %480 = vmatpush1.bf16.msra.mxu0 0
    %481 = vmatprep.subr.bf16.mxu0 0
    %482 = vmatpush1.bf16.msra.mxu0 0
    %483 = vmatprep.subr.bf16.mxu0 0
    %484 = vmatpush1.bf16.msra.mxu0 0
    %485 = vmatprep.subr.bf16.mxu0 0
    %486 = vmatpush1.bf16.msra.mxu0 0
    %487 = vmatprep.subr.bf16.mxu0 0
    %488 = vmatpush1.bf16.msra.mxu0 0
    %489 = vmatprep.subr.bf16.mxu0 0
    %490 = vmatpush1.bf16.msra.mxu0 0
    %491 = vmatprep.subr.bf16.mxu0 0
    %492 = vmatpush1.bf16.msra.mxu0 0
    %493 = vmatprep.subr.bf16.mxu0 0
    %494 = vmatpush1.bf16.msra.mxu0 0
    %495 = vmatprep.subr.bf16.mxu0 0
    %496 = vmatpush1.bf16.msra.mxu0 0
    %497 = vmatprep.subr.bf16.mxu0 0
    %498 = vmatpush1.bf16.msra.mxu0 0
    %499 = vmatprep.mubr.bf16.mxu0 0
    %500 = vmatmul.mubr.bf16.gmra.mrb[0].mxu0 %v453
    %v501 = vpop.f32.mrb[0].mxu0
    %v502 = vadd.f32 %v405, %v501
    %v503 = vpop.f32.mrb[0].mxu0
    %v504 = vadd.f32 %v407, %v503
    %v505 = vpop.f32.mrb[0].mxu0
    %v506 = vpop.f32.mrb[0].mxu0
    %507 = vdwg.mxu0
    %508 = vmatprep.subr.bf16.mxu0 %v465
    %509 = vmatpush1.bf16.msra.mxu0 %v462
    %510 = vmatprep.subr.bf16.mxu0 0
    %511 = vmatpush1.bf16.msra.mxu0 0
    %512 = vmatprep.subr.bf16.mxu0 0
    %513 = vmatpush1.bf16.msra.mxu0 0
    %514 = vmatprep.subr.bf16.mxu0 0
    %515 = vmatpush1.bf16.msra.mxu0 0
    %516 = vmatprep.subr.bf16.mxu0 0
    %517 = vmatpush1.bf16.msra.mxu0 0
    %518 = vmatprep.subr.bf16.mxu0 0
    %519 = vmatpush1.bf16.msra.mxu0 0
    %520 = vmatprep.subr.bf16.mxu0 0
    %521 = vmatpush1.bf16.msra.mxu0 0
    %522 = vmatprep.subr.bf16.mxu0 0
    %523 = vmatpush1.bf16.msra.mxu0 0
    %524 = vmatprep.subr.bf16.mxu0 0
    %525 = vmatpush1.bf16.msra.mxu0 0
    %526 = vmatprep.subr.bf16.mxu0 0
    %527 = vmatpush1.bf16.msra.mxu0 0
    %528 = vmatprep.subr.bf16.mxu0 0
    %529 = vmatpush1.bf16.msra.mxu0 0
    %530 = vmatprep.subr.bf16.mxu0 0
    %531 = vmatpush1.bf16.msra.mxu0 0
    %532 = vmatprep.subr.bf16.mxu0 0
    %533 = vmatpush1.bf16.msra.mxu0 0
    %534 = vmatprep.subr.bf16.mxu0 0
    %535 = vmatpush1.bf16.msra.mxu0 0
    %536 = vmatprep.subr.bf16.mxu0 0
    %537 = vmatpush1.bf16.msra.mxu0 0
    %538 = vmatprep.subr.bf16.mxu0 0
    %539 = vmatpush1.bf16.msra.mxu0 0
    %540 = vmatprep.mubr.bf16.mxu0 0
    %541 = vmatmul.mubr.bf16.gmra.mrb[0].mxu0 %v453
    %v542 = vpop.f32.mrb[0].mxu0
    %v543 = vadd.f32 %v446, %v542
    %v544 = vpop.f32.mrb[0].mxu0
    %v545 = vadd.f32 %v448, %v544
    %v546 = vpop.f32.mrb[0].mxu0
    %v547 = vpop.f32.mrb[0].mxu0
    %548 = vdwg.mxu0
    %549 = vrot.lane.b32.xlu0 %v256, 15
    %v550 = vpop.permute.xlu0 %549
    %551 = vrot.lane.b32.xlu0 %v257, 15
    %v552 = vpop.permute.xlu0 %551
    %553 = vrot.lane.b32.xlu0 %v258, 15
    %v554 = vpop.permute.xlu0 %553
    %555 = vrot.lane.b32.xlu0 %v259, 15
    %v556 = vpop.permute.xlu0 %555
    %vm557 = vcmp.lt.s32.totalorder %v286, 15
    %v558 = vsel %vm557, %v554, %v556
    %v559 = vsel %vm557, %v552, %v554
    %v560 = vsel %vm557, %v550, %v552
    %v561 = vsel %vm557, %v556, %v550
    %v562 = vlaneseq
    %v563 = vshrl.u32 %v562, 7
    %v564 = vsub.s32 2, %v563
    %v565 = vrot.slane %v269, %v564
    %v566 = vlaneseq
    %v567 = vshrl.u32 %v566, 7
    %v568 = vsub.s32 2, %v567
    %v569 = vrot.slane %v270, %v568
    %v570 = vlaneseq
    %v571 = vshrl.u32 %v570, 7
    %v572 = vsub.s32 2, %v571
    %v573 = vrot.slane %v271, %v572
    %v574 = vlaneseq
    %v575 = vshrl.u32 %v574, 7
    %v576 = vsub.s32 2, %v575
    %v577 = vrot.slane %v272, %v576
    %v578 = vmul.f32 %v561, %v565
    %v579 = vmul.f32 %v560, %v569
    %v580 = vmul.f32 %v559, %v573
    %v581 = vmul.f32 %v558, %v577
    %v582 = vpack.c.bf16 %v578, %v578
    %v583 = vpack.c.bf16 %v579, %v579
    %v584 = vpack.c.bf16 %v580, %v580
    %v585 = vpack.c.bf16 %v581, %v581
    %v587 = vsel %vm353, %v262, 0
    %v590 = vsel %vm357, %v582, 0
    %v593 = vsel %vm357, %v583, 0
    %v596 = vsel %vm357, %v584, 0
    %v599 = vsel %vm357, %v585, 0
    %601 = vmatprep.subr.bf16.mxu0 %v593
    %602 = vmatpush1.bf16.msra.mxu0 %v590
    %603 = vmatprep.subr.bf16.mxu0 0
    %604 = vmatpush1.bf16.msra.mxu0 0
    %605 = vmatprep.subr.bf16.mxu0 0
    %606 = vmatpush1.bf16.msra.mxu0 0
    %607 = vmatprep.subr.bf16.mxu0 0
    %608 = vmatpush1.bf16.msra.mxu0 0
    %609 = vmatprep.subr.bf16.mxu0 0
    %610 = vmatpush1.bf16.msra.mxu0 0
    %611 = vmatprep.subr.bf16.mxu0 0
    %612 = vmatpush1.bf16.msra.mxu0 0
    %613 = vmatprep.subr.bf16.mxu0 0
    %614 = vmatpush1.bf16.msra.mxu0 0
    %615 = vmatprep.subr.bf16.mxu0 0
    %616 = vmatpush1.bf16.msra.mxu0 0
    %617 = vmatprep.subr.bf16.mxu0 0
    %618 = vmatpush1.bf16.msra.mxu0 0
    %619 = vmatprep.subr.bf16.mxu0 0
    %620 = vmatpush1.bf16.msra.mxu0 0
    %621 = vmatprep.subr.bf16.mxu0 0
    %622 = vmatpush1.bf16.msra.mxu0 0
    %623 = vmatprep.subr.bf16.mxu0 0
    %624 = vmatpush1.bf16.msra.mxu0 0
    %625 = vmatprep.subr.bf16.mxu0 0
    %626 = vmatpush1.bf16.msra.mxu0 0
    %627 = vmatprep.subr.bf16.mxu0 0
    %628 = vmatpush1.bf16.msra.mxu0 0
    %629 = vmatprep.subr.bf16.mxu0 0
    %630 = vmatpush1.bf16.msra.mxu0 0
    %631 = vmatprep.subr.bf16.mxu0 0
    %632 = vmatpush1.bf16.msra.mxu0 0
    %633 = vmatprep.mubr.bf16.mxu0 0
    %634 = vmatmul.mubr.bf16.gmra.mrb[0].mxu0 %v587
    %v635 = vpop.f32.mrb[0].mxu0
    %v636 = vadd.f32 0.0, %v635
    %v637 = vpop.f32.mrb[0].mxu0
    %v638 = vadd.f32 0.0, %v637
    %v639 = vpop.f32.mrb[0].mxu0
    %v640 = vpop.f32.mrb[0].mxu0
    %641 = vdwg.mxu0
    %642 = vmatprep.subr.bf16.mxu0 %v599
    %643 = vmatpush1.bf16.msra.mxu0 %v596
    %644 = vmatprep.subr.bf16.mxu0 0
    %645 = vmatpush1.bf16.msra.mxu0 0
    %646 = vmatprep.subr.bf16.mxu0 0
    %647 = vmatpush1.bf16.msra.mxu0 0
    %648 = vmatprep.subr.bf16.mxu0 0
    %649 = vmatpush1.bf16.msra.mxu0 0
    %650 = vmatprep.subr.bf16.mxu0 0
    %651 = vmatpush1.bf16.msra.mxu0 0
    %652 = vmatprep.subr.bf16.mxu0 0
    %653 = vmatpush1.bf16.msra.mxu0 0
    %654 = vmatprep.subr.bf16.mxu0 0
    %655 = vmatpush1.bf16.msra.mxu0 0
    %656 = vmatprep.subr.bf16.mxu0 0
    %657 = vmatpush1.bf16.msra.mxu0 0
    %658 = vmatprep.subr.bf16.mxu0 0
    %659 = vmatpush1.bf16.msra.mxu0 0
    %660 = vmatprep.subr.bf16.mxu0 0
    %661 = vmatpush1.bf16.msra.mxu0 0
    %662 = vmatprep.subr.bf16.mxu0 0
    %663 = vmatpush1.bf16.msra.mxu0 0
    %664 = vmatprep.subr.bf16.mxu0 0
    %665 = vmatpush1.bf16.msra.mxu0 0
    %666 = vmatprep.subr.bf16.mxu0 0
    %667 = vmatpush1.bf16.msra.mxu0 0
    %668 = vmatprep.subr.bf16.mxu0 0
    %669 = vmatpush1.bf16.msra.mxu0 0
    %670 = vmatprep.subr.bf16.mxu0 0
    %671 = vmatpush1.bf16.msra.mxu0 0
    %672 = vmatprep.subr.bf16.mxu0 0
    %673 = vmatpush1.bf16.msra.mxu0 0
    %674 = vmatprep.mubr.bf16.mxu0 0
    %675 = vmatmul.mubr.bf16.gmra.mrb[0].mxu0 %v587
    %v676 = vpop.f32.mrb[0].mxu0
    %v677 = vadd.f32 0.0, %v676
    %v678 = vpop.f32.mrb[0].mxu0
    %v679 = vadd.f32 0.0, %v678
    %v680 = vpop.f32.mrb[0].mxu0
    %v681 = vpop.f32.mrb[0].mxu0
    %682 = vdwg.mxu0
    %v683 = vadd.f32 %v502, %v636
    %v684 = vadd.f32 %v504, %v638
    %v685 = vadd.f32 %v543, %v677
    %v686 = vadd.f32 %v545, %v679
    %687 = vrot.lane.b32.xlu0 %v256, 1
    %v688 = vpop.permute.xlu0 %687
    %689 = vrot.lane.b32.xlu0 %v257, 1
    %v690 = vpop.permute.xlu0 %689
    %691 = vrot.lane.b32.xlu0 %v258, 1
    %v692 = vpop.permute.xlu0 %691
    %693 = vrot.lane.b32.xlu0 %v259, 1
    %v694 = vpop.permute.xlu0 %693
    %vm695 = vcmp.lt.s32.totalorder %v286, 1
    %v696 = vsel %vm695, %v692, %v694
    %v697 = vsel %vm695, %v690, %v692
    %v698 = vsel %vm695, %v688, %v690
    %v699 = vsel %vm695, %v694, %v688
    %v700 = vlaneseq
    %v701 = vshrl.u32 %v700, 7
    %v702 = vsub.s32 3, %v701
    %v703 = vrot.slane %v269, %v702
    %v704 = vlaneseq
    %v705 = vshrl.u32 %v704, 7
    %v706 = vsub.s32 3, %v705
    %v707 = vrot.slane %v270, %v706
    %v708 = vlaneseq
    %v709 = vshrl.u32 %v708, 7
    %v710 = vsub.s32 3, %v709
    %v711 = vrot.slane %v271, %v710
    %v712 = vlaneseq
    %v713 = vshrl.u32 %v712, 7
    %v714 = vsub.s32 3, %v713
    %v715 = vrot.slane %v272, %v714
    %v716 = vmul.f32 %v699, %v703
    %v717 = vmul.f32 %v698, %v707
    %v718 = vmul.f32 %v697, %v711
    %v719 = vmul.f32 %v696, %v715
    %v720 = vpack.c.bf16 %v716, %v716
    %v721 = vpack.c.bf16 %v717, %v717
    %v722 = vpack.c.bf16 %v718, %v718
    %v723 = vpack.c.bf16 %v719, %v719
    %v725 = vsel %vm353, %v263, 0
    %v728 = vsel %vm357, %v720, 0
    %v731 = vsel %vm357, %v721, 0
    %v734 = vsel %vm357, %v722, 0
    %v737 = vsel %vm357, %v723, 0
    %739 = vmatprep.subr.bf16.mxu0 %v731
    %740 = vmatpush1.bf16.msra.mxu0 %v728
    %741 = vmatprep.subr.bf16.mxu0 0
    %742 = vmatpush1.bf16.msra.mxu0 0
    %743 = vmatprep.subr.bf16.mxu0 0
    %744 = vmatpush1.bf16.msra.mxu0 0
    %745 = vmatprep.subr.bf16.mxu0 0
    %746 = vmatpush1.bf16.msra.mxu0 0
    %747 = vmatprep.subr.bf16.mxu0 0
    %748 = vmatpush1.bf16.msra.mxu0 0
    %749 = vmatprep.subr.bf16.mxu0 0
    %750 = vmatpush1.bf16.msra.mxu0 0
    %751 = vmatprep.subr.bf16.mxu0 0
    %752 = vmatpush1.bf16.msra.mxu0 0
    %753 = vmatprep.subr.bf16.mxu0 0
    %754 = vmatpush1.bf16.msra.mxu0 0
    %755 = vmatprep.subr.bf16.mxu0 0
    %756 = vmatpush1.bf16.msra.mxu0 0
    %757 = vmatprep.subr.bf16.mxu0 0
    %758 = vmatpush1.bf16.msra.mxu0 0
    %759 = vmatprep.subr.bf16.mxu0 0
    %760 = vmatpush1.bf16.msra.mxu0 0
    %761 = vmatprep.subr.bf16.mxu0 0
    %762 = vmatpush1.bf16.msra.mxu0 0
    %763 = vmatprep.subr.bf16.mxu0 0
    %764 = vmatpush1.bf16.msra.mxu0 0
    %765 = vmatprep.subr.bf16.mxu0 0
    %766 = vmatpush1.bf16.msra.mxu0 0
    %767 = vmatprep.subr.bf16.mxu0 0
    %768 = vmatpush1.bf16.msra.mxu0 0
    %769 = vmatprep.subr.bf16.mxu0 0
    %770 = vmatpush1.bf16.msra.mxu0 0
    %771 = vmatprep.mubr.bf16.mxu0 0
    %772 = vmatmul.mubr.bf16.gmra.mrb[0].mxu0 %v725
    %v773 = vpop.f32.mrb[0].mxu0
    %v774 = vadd.f32 0.0, %v773
    %v775 = vpop.f32.mrb[0].mxu0
    %v776 = vadd.f32 0.0, %v775
    %v777 = vpop.f32.mrb[0].mxu0
    %v778 = vpop.f32.mrb[0].mxu0
    %779 = vdwg.mxu0
    %780 = vmatprep.subr.bf16.mxu0 %v737
    %781 = vmatpush1.bf16.msra.mxu0 %v734
    %782 = vmatprep.subr.bf16.mxu0 0
    %783 = vmatpush1.bf16.msra.mxu0 0
    %784 = vmatprep.subr.bf16.mxu0 0
    %785 = vmatpush1.bf16.msra.mxu0 0
    %786 = vmatprep.subr.bf16.mxu0 0
    %787 = vmatpush1.bf16.msra.mxu0 0
    %788 = vmatprep.subr.bf16.mxu0 0
    %789 = vmatpush1.bf16.msra.mxu0 0
    %790 = vmatprep.subr.bf16.mxu0 0
    %791 = vmatpush1.bf16.msra.mxu0 0
    %792 = vmatprep.subr.bf16.mxu0 0
    %793 = vmatpush1.bf16.msra.mxu0 0
    %794 = vmatprep.subr.bf16.mxu0 0
    %795 = vmatpush1.bf16.msra.mxu0 0
    %796 = vmatprep.subr.bf16.mxu0 0
    %797 = vmatpush1.bf16.msra.mxu0 0
    %798 = vmatprep.subr.bf16.mxu0 0
    %799 = vmatpush1.bf16.msra.mxu0 0
    %800 = vmatprep.subr.bf16.mxu0 0
    %801 = vmatpush1.bf16.msra.mxu0 0
    %802 = vmatprep.subr.bf16.mxu0 0
    %803 = vmatpush1.bf16.msra.mxu0 0
    %804 = vmatprep.subr.bf16.mxu0 0
    %805 = vmatpush1.bf16.msra.mxu0 0
    %806 = vmatprep.subr.bf16.mxu0 0
    %807 = vmatpush1.bf16.msra.mxu0 0
    %808 = vmatprep.subr.bf16.mxu0 0
    %809 = vmatpush1.bf16.msra.mxu0 0
    %810 = vmatprep.subr.bf16.mxu0 0
    %811 = vmatpush1.bf16.msra.mxu0 0
    %812 = vmatprep.mubr.bf16.mxu0 0
    %813 = vmatmul.mubr.bf16.gmra.mrb[0].mxu0 %v725
    %v814 = vpop.f32.mrb[0].mxu0
    %v815 = vadd.f32 0.0, %v814
    %v816 = vpop.f32.mrb[0].mxu0
    %v817 = vadd.f32 0.0, %v816
    %v818 = vpop.f32.mrb[0].mxu0
    %v819 = vpop.f32.mrb[0].mxu0
    %820 = vdwg.mxu0
    %v821 = vadd.f32 %v683, %v774
    %v822 = vadd.f32 %v684, %v776
    %v823 = vadd.f32 %v685, %v815
    %v824 = vadd.f32 %v686, %v817
    %v825 = vlaneseq
    %v826 = vshrl.u32 %v825, 7
    %v827 = vsub.s32 4, %v826
    %v828 = vrot.slane %v269, %v827
    %v829 = vlaneseq
    %v830 = vshrl.u32 %v829, 7
    %v831 = vsub.s32 4, %v830
    %v832 = vrot.slane %v270, %v831
    %v833 = vlaneseq
    %v834 = vshrl.u32 %v833, 7
    %v835 = vsub.s32 4, %v834
    %v836 = vrot.slane %v271, %v835
    %v837 = vlaneseq
    %v838 = vshrl.u32 %v837, 7
    %v839 = vsub.s32 4, %v838
    %v840 = vrot.slane %v272, %v839
    %v841 = vmul.f32 %v256, %v828
    %v842 = vmul.f32 %v257, %v832
    %v843 = vmul.f32 %v258, %v836
    %v844 = vmul.f32 %v259, %v840
    %v845 = vpack.c.bf16 %v841, %v841
    %v846 = vpack.c.bf16 %v842, %v842
    %v847 = vpack.c.bf16 %v843, %v843
    %v848 = vpack.c.bf16 %v844, %v844
    %v850 = vsel %vm353, %v264, 0
    %v853 = vsel %vm357, %v845, 0
    %v856 = vsel %vm357, %v846, 0
    %v859 = vsel %vm357, %v847, 0
    %v862 = vsel %vm357, %v848, 0
    %864 = vmatprep.subr.bf16.mxu0 %v856
    %865 = vmatpush1.bf16.msra.mxu0 %v853
    %866 = vmatprep.subr.bf16.mxu0 0
    %867 = vmatpush1.bf16.msra.mxu0 0
    %868 = vmatprep.subr.bf16.mxu0 0
    %869 = vmatpush1.bf16.msra.mxu0 0
    %870 = vmatprep.subr.bf16.mxu0 0
    %871 = vmatpush1.bf16.msra.mxu0 0
    %872 = vmatprep.subr.bf16.mxu0 0
    %873 = vmatpush1.bf16.msra.mxu0 0
    %874 = vmatprep.subr.bf16.mxu0 0
    %875 = vmatpush1.bf16.msra.mxu0 0
    %876 = vmatprep.subr.bf16.mxu0 0
    %877 = vmatpush1.bf16.msra.mxu0 0
    %878 = vmatprep.subr.bf16.mxu0 0
    %879 = vmatpush1.bf16.msra.mxu0 0
    %880 = vmatprep.subr.bf16.mxu0 0
    %881 = vmatpush1.bf16.msra.mxu0 0
    %882 = vmatprep.subr.bf16.mxu0 0
    %883 = vmatpush1.bf16.msra.mxu0 0
    %884 = vmatprep.subr.bf16.mxu0 0
    %885 = vmatpush1.bf16.msra.mxu0 0
    %886 = vmatprep.subr.bf16.mxu0 0
    %887 = vmatpush1.bf16.msra.mxu0 0
    %888 = vmatprep.subr.bf16.mxu0 0
    %889 = vmatpush1.bf16.msra.mxu0 0
    %890 = vmatprep.subr.bf16.mxu0 0
    %891 = vmatpush1.bf16.msra.mxu0 0
    %892 = vmatprep.subr.bf16.mxu0 0
    %893 = vmatpush1.bf16.msra.mxu0 0
    %894 = vmatprep.subr.bf16.mxu0 0
    %895 = vmatpush1.bf16.msra.mxu0 0
    %896 = vmatprep.mubr.bf16.mxu0 0
    %897 = vmatmul.mubr.bf16.gmra.mrb[0].mxu0 %v850
    %v898 = vpop.f32.mrb[0].mxu0
    %v899 = vadd.f32 0.0, %v898
    %v900 = vpop.f32.mrb[0].mxu0
    %v901 = vadd.f32 0.0, %v900
    %v902 = vpop.f32.mrb[0].mxu0
    %v903 = vpop.f32.mrb[0].mxu0
    %904 = vdwg.mxu0
    %905 = vmatprep.subr.bf16.mxu0 %v862
    %906 = vmatpush1.bf16.msra.mxu0 %v859
    %907 = vmatprep.subr.bf16.mxu0 0
    %908 = vmatpush1.bf16.msra.mxu0 0
    %909 = vmatprep.subr.bf16.mxu0 0
    %910 = vmatpush1.bf16.msra.mxu0 0
    %911 = vmatprep.subr.bf16.mxu0 0
    %912 = vmatpush1.bf16.msra.mxu0 0
    %913 = vmatprep.subr.bf16.mxu0 0
    %914 = vmatpush1.bf16.msra.mxu0 0
    %915 = vmatprep.subr.bf16.mxu0 0
    %916 = vmatpush1.bf16.msra.mxu0 0
    %917 = vmatprep.subr.bf16.mxu0 0
    %918 = vmatpush1.bf16.msra.mxu0 0
    %919 = vmatprep.subr.bf16.mxu0 0
    %920 = vmatpush1.bf16.msra.mxu0 0
    %921 = vmatprep.subr.bf16.mxu0 0
    %922 = vmatpush1.bf16.msra.mxu0 0
    %923 = vmatprep.subr.bf16.mxu0 0
    %924 = vmatpush1.bf16.msra.mxu0 0
    %925 = vmatprep.subr.bf16.mxu0 0
    %926 = vmatpush1.bf16.msra.mxu0 0
    %927 = vmatprep.subr.bf16.mxu0 0
    %928 = vmatpush1.bf16.msra.mxu0 0
    %929 = vmatprep.subr.bf16.mxu0 0
    %930 = vmatpush1.bf16.msra.mxu0 0
    %931 = vmatprep.subr.bf16.mxu0 0
    %932 = vmatpush1.bf16.msra.mxu0 0
    %933 = vmatprep.subr.bf16.mxu0 0
    %934 = vmatpush1.bf16.msra.mxu0 0
    %935 = vmatprep.subr.bf16.mxu0 0
    %936 = vmatpush1.bf16.msra.mxu0 0
    %937 = vmatprep.mubr.bf16.mxu0 0
    %938 = vmatmul.mubr.bf16.gmra.mrb[0].mxu0 %v850
    %v939 = vpop.f32.mrb[0].mxu0
    %v940 = vadd.f32 0.0, %v939
    %v941 = vpop.f32.mrb[0].mxu0
    %v942 = vadd.f32 0.0, %v941
    %v943 = vpop.f32.mrb[0].mxu0
    %v944 = vpop.f32.mrb[0].mxu0
    %945 = vdwg.mxu0
    %v946 = vadd.f32 %v821, %v899
    %v947 = vadd.f32 %v822, %v901
    %v948 = vadd.f32 %v823, %v940
    %v949 = vadd.f32 %v824, %v942
    %950 = vrot.lane.b32.xlu0 %v256, 127
    %v951 = vpop.permute.xlu0 %950
    %952 = vrot.lane.b32.xlu0 %v257, 127
    %v953 = vpop.permute.xlu0 %952
    %954 = vrot.lane.b32.xlu0 %v258, 127
    %v955 = vpop.permute.xlu0 %954
    %956 = vrot.lane.b32.xlu0 %v259, 127
    %v957 = vpop.permute.xlu0 %956
    %vm958 = vcmp.lt.s32.totalorder %v286, 127
    %v959 = vsel %vm958, %v955, %v957
    %v960 = vsel %vm958, %v953, %v955
    %v961 = vsel %vm958, %v951, %v953
    %v962 = vsel %vm958, %v957, %v951
    %v963 = vlaneseq
    %v964 = vshrl.u32 %v963, 7
    %v965 = vsub.s32 5, %v964
    %v966 = vrot.slane %v269, %v965
    %v967 = vlaneseq
    %v968 = vshrl.u32 %v967, 7
    %v969 = vsub.s32 5, %v968
    %v970 = vrot.slane %v270, %v969
    %v971 = vlaneseq
    %v972 = vshrl.u32 %v971, 7
    %v973 = vsub.s32 5, %v972
    %v974 = vrot.slane %v271, %v973
    %v975 = vlaneseq
    %v976 = vshrl.u32 %v975, 7
    %v977 = vsub.s32 5, %v976
    %v978 = vrot.slane %v272, %v977
    %v979 = vmul.f32 %v961, %v966
    %v980 = vmul.f32 %v960, %v970
    %v981 = vmul.f32 %v959, %v974
    %v982 = vmul.f32 %v962, %v978
    %v983 = vpack.c.bf16 %v979, %v979
    %v984 = vpack.c.bf16 %v980, %v980
    %v985 = vpack.c.bf16 %v981, %v981
    %v986 = vpack.c.bf16 %v982, %v982
    %v988 = vsel %vm353, %v265, 0
    %v991 = vsel %vm357, %v983, 0
    %v994 = vsel %vm357, %v984, 0
    %v997 = vsel %vm357, %v985, 0
    %v1000 = vsel %vm357, %v986, 0
    %1002 = vmatprep.subr.bf16.mxu0 %v994
    %1003 = vmatpush1.bf16.msra.mxu0 %v991
    %1004 = vmatprep.subr.bf16.mxu0 0
    %1005 = vmatpush1.bf16.msra.mxu0 0
    %1006 = vmatprep.subr.bf16.mxu0 0
    %1007 = vmatpush1.bf16.msra.mxu0 0
    %1008 = vmatprep.subr.bf16.mxu0 0
    %1009 = vmatpush1.bf16.msra.mxu0 0
    %1010 = vmatprep.subr.bf16.mxu0 0
    %1011 = vmatpush1.bf16.msra.mxu0 0
    %1012 = vmatprep.subr.bf16.mxu0 0
    %1013 = vmatpush1.bf16.msra.mxu0 0
    %1014 = vmatprep.subr.bf16.mxu0 0
    %1015 = vmatpush1.bf16.msra.mxu0 0
    %1016 = vmatprep.subr.bf16.mxu0 0
    %1017 = vmatpush1.bf16.msra.mxu0 0
    %1018 = vmatprep.subr.bf16.mxu0 0
    %1019 = vmatpush1.bf16.msra.mxu0 0
    %1020 = vmatprep.subr.bf16.mxu0 0
    %1021 = vmatpush1.bf16.msra.mxu0 0
    %1022 = vmatprep.subr.bf16.mxu0 0
    %1023 = vmatpush1.bf16.msra.mxu0 0
    %1024 = vmatprep.subr.bf16.mxu0 0
    %1025 = vmatpush1.bf16.msra.mxu0 0
    %1026 = vmatprep.subr.bf16.mxu0 0
    %1027 = vmatpush1.bf16.msra.mxu0 0
    %1028 = vmatprep.subr.bf16.mxu0 0
    %1029 = vmatpush1.bf16.msra.mxu0 0
    %1030 = vmatprep.subr.bf16.mxu0 0
    %1031 = vmatpush1.bf16.msra.mxu0 0
    %1032 = vmatprep.subr.bf16.mxu0 0
    %1033 = vmatpush1.bf16.msra.mxu0 0
    %1034 = vmatprep.mubr.bf16.mxu0 0
    %1035 = vmatmul.mubr.bf16.gmra.mrb[0].mxu0 %v988
    %v1036 = vpop.f32.mrb[0].mxu0
    %v1037 = vadd.f32 0.0, %v1036
    %v1038 = vpop.f32.mrb[0].mxu0
    %v1039 = vadd.f32 0.0, %v1038
    %v1040 = vpop.f32.mrb[0].mxu0
    %v1041 = vpop.f32.mrb[0].mxu0
    %1042 = vdwg.mxu0
    %1043 = vmatprep.subr.bf16.mxu0 %v1000
    %1044 = vmatpush1.bf16.msra.mxu0 %v997
    %1045 = vmatprep.subr.bf16.mxu0 0
    %1046 = vmatpush1.bf16.msra.mxu0 0
    %1047 = vmatprep.subr.bf16.mxu0 0
    %1048 = vmatpush1.bf16.msra.mxu0 0
    %1049 = vmatprep.subr.bf16.mxu0 0
    %1050 = vmatpush1.bf16.msra.mxu0 0
    %1051 = vmatprep.subr.bf16.mxu0 0
    %1052 = vmatpush1.bf16.msra.mxu0 0
    %1053 = vmatprep.subr.bf16.mxu0 0
    %1054 = vmatpush1.bf16.msra.mxu0 0
    %1055 = vmatprep.subr.bf16.mxu0 0
    %1056 = vmatpush1.bf16.msra.mxu0 0
    %1057 = vmatprep.subr.bf16.mxu0 0
    %1058 = vmatpush1.bf16.msra.mxu0 0
    %1059 = vmatprep.subr.bf16.mxu0 0
    %1060 = vmatpush1.bf16.msra.mxu0 0
    %1061 = vmatprep.subr.bf16.mxu0 0
    %1062 = vmatpush1.bf16.msra.mxu0 0
    %1063 = vmatprep.subr.bf16.mxu0 0
    %1064 = vmatpush1.bf16.msra.mxu0 0
    %1065 = vmatprep.subr.bf16.mxu0 0
    %1066 = vmatpush1.bf16.msra.mxu0 0
    %1067 = vmatprep.subr.bf16.mxu0 0
    %1068 = vmatpush1.bf16.msra.mxu0 0
    %1069 = vmatprep.subr.bf16.mxu0 0
    %1070 = vmatpush1.bf16.msra.mxu0 0
    %1071 = vmatprep.subr.bf16.mxu0 0
    %1072 = vmatpush1.bf16.msra.mxu0 0
    %1073 = vmatprep.subr.bf16.mxu0 0
    %1074 = vmatpush1.bf16.msra.mxu0 0
    %1075 = vmatprep.mubr.bf16.mxu0 0
    %1076 = vmatmul.mubr.bf16.gmra.mrb[0].mxu0 %v988
    %v1077 = vpop.f32.mrb[0].mxu0
    %v1078 = vadd.f32 0.0, %v1077
    %v1079 = vpop.f32.mrb[0].mxu0
    %v1080 = vadd.f32 0.0, %v1079
    %v1081 = vpop.f32.mrb[0].mxu0
    %v1082 = vpop.f32.mrb[0].mxu0
    %1083 = vdwg.mxu0
    %v1084 = vadd.f32 %v946, %v1037
    %v1085 = vadd.f32 %v947, %v1039
    %v1086 = vadd.f32 %v948, %v1078
    %v1087 = vadd.f32 %v949, %v1080
    %1088 = vrot.lane.b32.xlu0 %v256, 113
    %v1089 = vpop.permute.xlu0 %1088
    %1090 = vrot.lane.b32.xlu0 %v257, 113
    %v1091 = vpop.permute.xlu0 %1090
    %1092 = vrot.lane.b32.xlu0 %v258, 113
    %v1093 = vpop.permute.xlu0 %1092
    %1094 = vrot.lane.b32.xlu0 %v259, 113
    %v1095 = vpop.permute.xlu0 %1094
    %vm1096 = vcmp.lt.s32.totalorder %v286, 113
    %v1097 = vsel %vm1096, %v1093, %v1095
    %v1098 = vsel %vm1096, %v1091, %v1093
    %v1099 = vsel %vm1096, %v1089, %v1091
    %v1100 = vsel %vm1096, %v1095, %v1089
    %v1101 = vlaneseq
    %v1102 = vshrl.u32 %v1101, 7
    %v1103 = vsub.s32 6, %v1102
    %v1104 = vrot.slane %v269, %v1103
    %v1105 = vlaneseq
    %v1106 = vshrl.u32 %v1105, 7
    %v1107 = vsub.s32 6, %v1106
    %v1108 = vrot.slane %v270, %v1107
    %v1109 = vlaneseq
    %v1110 = vshrl.u32 %v1109, 7
    %v1111 = vsub.s32 6, %v1110
    %v1112 = vrot.slane %v271, %v1111
    %v1113 = vlaneseq
    %v1114 = vshrl.u32 %v1113, 7
    %v1115 = vsub.s32 6, %v1114
    %v1116 = vrot.slane %v272, %v1115
    %v1117 = vmul.f32 %v1099, %v1104
    %v1118 = vmul.f32 %v1098, %v1108
    %v1119 = vmul.f32 %v1097, %v1112
    %v1120 = vmul.f32 %v1100, %v1116
    %v1121 = vpack.c.bf16 %v1117, %v1117
    %v1122 = vpack.c.bf16 %v1118, %v1118
    %v1123 = vpack.c.bf16 %v1119, %v1119
    %v1124 = vpack.c.bf16 %v1120, %v1120
    %v1126 = vsel %vm353, %v266, 0
    %v1129 = vsel %vm357, %v1121, 0
    %v1132 = vsel %vm357, %v1122, 0
    %v1135 = vsel %vm357, %v1123, 0
    %v1138 = vsel %vm357, %v1124, 0
    %1140 = vmatprep.subr.bf16.mxu0 %v1132
    %1141 = vmatpush1.bf16.msra.mxu0 %v1129
    %1142 = vmatprep.subr.bf16.mxu0 0
    %1143 = vmatpush1.bf16.msra.mxu0 0
    %1144 = vmatprep.subr.bf16.mxu0 0
    %1145 = vmatpush1.bf16.msra.mxu0 0
    %1146 = vmatprep.subr.bf16.mxu0 0
    %1147 = vmatpush1.bf16.msra.mxu0 0
    %1148 = vmatprep.subr.bf16.mxu0 0
    %1149 = vmatpush1.bf16.msra.mxu0 0
    %1150 = vmatprep.subr.bf16.mxu0 0
    %1151 = vmatpush1.bf16.msra.mxu0 0
    %1152 = vmatprep.subr.bf16.mxu0 0
    %1153 = vmatpush1.bf16.msra.mxu0 0
    %1154 = vmatprep.subr.bf16.mxu0 0
    %1155 = vmatpush1.bf16.msra.mxu0 0
    %1156 = vmatprep.subr.bf16.mxu0 0
    %1157 = vmatpush1.bf16.msra.mxu0 0
    %1158 = vmatprep.subr.bf16.mxu0 0
    %1159 = vmatpush1.bf16.msra.mxu0 0
    %1160 = vmatprep.subr.bf16.mxu0 0
    %1161 = vmatpush1.bf16.msra.mxu0 0
    %1162 = vmatprep.subr.bf16.mxu0 0
    %1163 = vmatpush1.bf16.msra.mxu0 0
    %1164 = vmatprep.subr.bf16.mxu0 0
    %1165 = vmatpush1.bf16.msra.mxu0 0
    %1166 = vmatprep.subr.bf16.mxu0 0
    %1167 = vmatpush1.bf16.msra.mxu0 0
    %1168 = vmatprep.subr.bf16.mxu0 0
    %1169 = vmatpush1.bf16.msra.mxu0 0
    %1170 = vmatprep.subr.bf16.mxu0 0
    %1171 = vmatpush1.bf16.msra.mxu0 0
    %1172 = vmatprep.mubr.bf16.mxu0 0
    %1173 = vmatmul.mubr.bf16.gmra.mrb[0].mxu0 %v1126
    %v1174 = vpop.f32.mrb[0].mxu0
    %v1175 = vadd.f32 0.0, %v1174
    %v1176 = vpop.f32.mrb[0].mxu0
    %v1177 = vadd.f32 0.0, %v1176
    %v1178 = vpop.f32.mrb[0].mxu0
    %v1179 = vpop.f32.mrb[0].mxu0
    %1180 = vdwg.mxu0
    %1181 = vmatprep.subr.bf16.mxu0 %v1138
    %1182 = vmatpush1.bf16.msra.mxu0 %v1135
    %1183 = vmatprep.subr.bf16.mxu0 0
    %1184 = vmatpush1.bf16.msra.mxu0 0
    %1185 = vmatprep.subr.bf16.mxu0 0
    %1186 = vmatpush1.bf16.msra.mxu0 0
    %1187 = vmatprep.subr.bf16.mxu0 0
    %1188 = vmatpush1.bf16.msra.mxu0 0
    %1189 = vmatprep.subr.bf16.mxu0 0
    %1190 = vmatpush1.bf16.msra.mxu0 0
    %1191 = vmatprep.subr.bf16.mxu0 0
    %1192 = vmatpush1.bf16.msra.mxu0 0
    %1193 = vmatprep.subr.bf16.mxu0 0
    %1194 = vmatpush1.bf16.msra.mxu0 0
    %1195 = vmatprep.subr.bf16.mxu0 0
    %1196 = vmatpush1.bf16.msra.mxu0 0
    %1197 = vmatprep.subr.bf16.mxu0 0
    %1198 = vmatpush1.bf16.msra.mxu0 0
    %1199 = vmatprep.subr.bf16.mxu0 0
    %1200 = vmatpush1.bf16.msra.mxu0 0
    %1201 = vmatprep.subr.bf16.mxu0 0
    %1202 = vmatpush1.bf16.msra.mxu0 0
    %1203 = vmatprep.subr.bf16.mxu0 0
    %1204 = vmatpush1.bf16.msra.mxu0 0
    %1205 = vmatprep.subr.bf16.mxu0 0
    %1206 = vmatpush1.bf16.msra.mxu0 0
    %1207 = vmatprep.subr.bf16.mxu0 0
    %1208 = vmatpush1.bf16.msra.mxu0 0
    %1209 = vmatprep.subr.bf16.mxu0 0
    %1210 = vmatpush1.bf16.msra.mxu0 0
    %1211 = vmatprep.subr.bf16.mxu0 0
    %1212 = vmatpush1.bf16.msra.mxu0 0
    %1213 = vmatprep.mubr.bf16.mxu0 0
    %1214 = vmatmul.mubr.bf16.gmra.mrb[0].mxu0 %v1126
    %v1215 = vpop.f32.mrb[0].mxu0
    %v1216 = vadd.f32 0.0, %v1215
    %v1217 = vpop.f32.mrb[0].mxu0
    %v1218 = vadd.f32 0.0, %v1217
    %v1219 = vpop.f32.mrb[0].mxu0
    %v1220 = vpop.f32.mrb[0].mxu0
    %1221 = vdwg.mxu0
    %v1222 = vadd.f32 %v1084, %v1175
    %v1223 = vadd.f32 %v1085, %v1177
    %v1224 = vadd.f32 %v1086, %v1216
    %v1225 = vadd.f32 %v1087, %v1218
    %1226 = vrot.lane.b32.xlu0 %v256, 112
    %v1227 = vpop.permute.xlu0 %1226
    %1228 = vrot.lane.b32.xlu0 %v257, 112
    %v1229 = vpop.permute.xlu0 %1228
    %1230 = vrot.lane.b32.xlu0 %v258, 112
    %v1231 = vpop.permute.xlu0 %1230
    %1232 = vrot.lane.b32.xlu0 %v259, 112
    %v1233 = vpop.permute.xlu0 %1232
    %vm1234 = vcmp.lt.s32.totalorder %v286, 112
    %v1235 = vsel %vm1234, %v1231, %v1233
    %v1236 = vsel %vm1234, %v1229, %v1231
    %v1237 = vsel %vm1234, %v1227, %v1229
    %v1238 = vsel %vm1234, %v1233, %v1227
    %v1239 = vlaneseq
    %v1240 = vshrl.u32 %v1239, 7
    %v1241 = vsub.s32 7, %v1240
    %v1242 = vrot.slane %v269, %v1241
    %v1243 = vlaneseq
    %v1244 = vshrl.u32 %v1243, 7
    %v1245 = vsub.s32 7, %v1244
    %v1246 = vrot.slane %v270, %v1245
    %v1247 = vlaneseq
    %v1248 = vshrl.u32 %v1247, 7
    %v1249 = vsub.s32 7, %v1248
    %v1250 = vrot.slane %v271, %v1249
    %v1251 = vlaneseq
    %v1252 = vshrl.u32 %v1251, 7
    %v1253 = vsub.s32 7, %v1252
    %v1254 = vrot.slane %v272, %v1253
    %v1255 = vmul.f32 %v1237, %v1242
    %v1256 = vmul.f32 %v1236, %v1246
    %v1257 = vmul.f32 %v1235, %v1250
    %v1258 = vmul.f32 %v1238, %v1254
    %v1259 = vpack.c.bf16 %v1255, %v1255
    %v1260 = vpack.c.bf16 %v1256, %v1256
    %v1261 = vpack.c.bf16 %v1257, %v1257
    %v1262 = vpack.c.bf16 %v1258, %v1258
    %v1264 = vsel %vm353, %v267, 0
    %v1267 = vsel %vm357, %v1259, 0
    %v1270 = vsel %vm357, %v1260, 0
    %v1273 = vsel %vm357, %v1261, 0
    %v1276 = vsel %vm357, %v1262, 0
    %1278 = vmatprep.subr.bf16.mxu0 %v1270
    %1279 = vmatpush1.bf16.msra.mxu0 %v1267
    %1280 = vmatprep.subr.bf16.mxu0 0
    %1281 = vmatpush1.bf16.msra.mxu0 0
    %1282 = vmatprep.subr.bf16.mxu0 0
    %1283 = vmatpush1.bf16.msra.mxu0 0
    %1284 = vmatprep.subr.bf16.mxu0 0
    %1285 = vmatpush1.bf16.msra.mxu0 0
    %1286 = vmatprep.subr.bf16.mxu0 0
    %1287 = vmatpush1.bf16.msra.mxu0 0
    %1288 = vmatprep.subr.bf16.mxu0 0
    %1289 = vmatpush1.bf16.msra.mxu0 0
    %1290 = vmatprep.subr.bf16.mxu0 0
    %1291 = vmatpush1.bf16.msra.mxu0 0
    %1292 = vmatprep.subr.bf16.mxu0 0
    %1293 = vmatpush1.bf16.msra.mxu0 0
    %1294 = vmatprep.subr.bf16.mxu0 0
    %1295 = vmatpush1.bf16.msra.mxu0 0
    %1296 = vmatprep.subr.bf16.mxu0 0
    %1297 = vmatpush1.bf16.msra.mxu0 0
    %1298 = vmatprep.subr.bf16.mxu0 0
    %1299 = vmatpush1.bf16.msra.mxu0 0
    %1300 = vmatprep.subr.bf16.mxu0 0
    %1301 = vmatpush1.bf16.msra.mxu0 0
    %1302 = vmatprep.subr.bf16.mxu0 0
    %1303 = vmatpush1.bf16.msra.mxu0 0
    %1304 = vmatprep.subr.bf16.mxu0 0
    %1305 = vmatpush1.bf16.msra.mxu0 0
    %1306 = vmatprep.subr.bf16.mxu0 0
    %1307 = vmatpush1.bf16.msra.mxu0 0
    %1308 = vmatprep.subr.bf16.mxu0 0
    %1309 = vmatpush1.bf16.msra.mxu0 0
    %1310 = vmatprep.mubr.bf16.mxu0 0
    %1311 = vmatmul.mubr.bf16.gmra.mrb[0].mxu0 %v1264
    %v1312 = vpop.f32.mrb[0].mxu0
    %v1313 = vadd.f32 0.0, %v1312
    %v1314 = vpop.f32.mrb[0].mxu0
    %v1315 = vadd.f32 0.0, %v1314
    %v1316 = vpop.f32.mrb[0].mxu0
    %v1317 = vpop.f32.mrb[0].mxu0
    %1318 = vdwg.mxu0
    %1319 = vmatprep.subr.bf16.mxu0 %v1276
    %1320 = vmatpush1.bf16.msra.mxu0 %v1273
    %1321 = vmatprep.subr.bf16.mxu0 0
    %1322 = vmatpush1.bf16.msra.mxu0 0
    %1323 = vmatprep.subr.bf16.mxu0 0
    %1324 = vmatpush1.bf16.msra.mxu0 0
    %1325 = vmatprep.subr.bf16.mxu0 0
    %1326 = vmatpush1.bf16.msra.mxu0 0
    %1327 = vmatprep.subr.bf16.mxu0 0
    %1328 = vmatpush1.bf16.msra.mxu0 0
    %1329 = vmatprep.subr.bf16.mxu0 0
    %1330 = vmatpush1.bf16.msra.mxu0 0
    %1331 = vmatprep.subr.bf16.mxu0 0
    %1332 = vmatpush1.bf16.msra.mxu0 0
    %1333 = vmatprep.subr.bf16.mxu0 0
    %1334 = vmatpush1.bf16.msra.mxu0 0
    %1335 = vmatprep.subr.bf16.mxu0 0
    %1336 = vmatpush1.bf16.msra.mxu0 0
    %1337 = vmatprep.subr.bf16.mxu0 0
    %1338 = vmatpush1.bf16.msra.mxu0 0
    %1339 = vmatprep.subr.bf16.mxu0 0
    %1340 = vmatpush1.bf16.msra.mxu0 0
    %1341 = vmatprep.subr.bf16.mxu0 0
    %1342 = vmatpush1.bf16.msra.mxu0 0
    %1343 = vmatprep.subr.bf16.mxu0 0
    %1344 = vmatpush1.bf16.msra.mxu0 0
    %1345 = vmatprep.subr.bf16.mxu0 0
    %1346 = vmatpush1.bf16.msra.mxu0 0
    %1347 = vmatprep.subr.bf16.mxu0 0
    %1348 = vmatpush1.bf16.msra.mxu0 0
    %1349 = vmatprep.subr.bf16.mxu0 0
    %1350 = vmatpush1.bf16.msra.mxu0 0
    %1351 = vmatprep.mubr.bf16.mxu0 0
    %1352 = vmatmul.mubr.bf16.gmra.mrb[0].mxu0 %v1264
    %v1353 = vpop.f32.mrb[0].mxu0
    %v1354 = vadd.f32 0.0, %v1353
    %v1355 = vpop.f32.mrb[0].mxu0
    %v1356 = vadd.f32 0.0, %v1355
    %v1357 = vpop.f32.mrb[0].mxu0
    %v1358 = vpop.f32.mrb[0].mxu0
    %1359 = vdwg.mxu0
    %v1360 = vadd.f32 %v1222, %v1313
    %v1361 = vadd.f32 %v1223, %v1315
    %v1362 = vadd.f32 %v1224, %v1354
    %v1363 = vadd.f32 %v1225, %v1356
    %1364 = vrot.lane.b32.xlu0 %v256, 111
    %v1365 = vpop.permute.xlu0 %1364
    %1366 = vrot.lane.b32.xlu0 %v257, 111
    %v1367 = vpop.permute.xlu0 %1366
    %1368 = vrot.lane.b32.xlu0 %v258, 111
    %v1369 = vpop.permute.xlu0 %1368
    %1370 = vrot.lane.b32.xlu0 %v259, 111
    %v1371 = vpop.permute.xlu0 %1370
    %vm1372 = vcmp.lt.s32.totalorder %v286, 111
    %v1373 = vsel %vm1372, %v1369, %v1371
    %v1374 = vsel %vm1372, %v1367, %v1369
    %v1375 = vsel %vm1372, %v1365, %v1367
    %v1376 = vsel %vm1372, %v1371, %v1365
    %v1377 = vlaneseq
    %v1378 = vshrl.u32 %v1377, 7
    %v1379 = vsub.s32 0, %v1378
    %v1380 = vrot.slane %v273, %v1379
    %v1381 = vlaneseq
    %v1382 = vshrl.u32 %v1381, 7
    %v1383 = vsub.s32 0, %v1382
    %v1384 = vrot.slane %v274, %v1383
    %v1385 = vlaneseq
    %v1386 = vshrl.u32 %v1385, 7
    %v1387 = vsub.s32 0, %v1386
    %v1388 = vrot.slane %v275, %v1387
    %v1389 = vlaneseq
    %v1390 = vshrl.u32 %v1389, 7
    %v1391 = vsub.s32 0, %v1390
    %v1392 = vrot.slane %v276, %v1391
    %v1393 = vmul.f32 %v1375, %v1380
    %v1394 = vmul.f32 %v1374, %v1384
    %v1395 = vmul.f32 %v1373, %v1388
    %v1396 = vmul.f32 %v1376, %v1392
    %v1397 = vpack.c.bf16 %v1393, %v1393
    %v1398 = vpack.c.bf16 %v1394, %v1394
    %v1399 = vpack.c.bf16 %v1395, %v1395
    %v1400 = vpack.c.bf16 %v1396, %v1396
    %v1402 = vsel %vm353, %v268, 0
    %v1405 = vsel %vm357, %v1397, 0
    %v1408 = vsel %vm357, %v1398, 0
    %v1411 = vsel %vm357, %v1399, 0
    %v1414 = vsel %vm357, %v1400, 0
    %1416 = vmatprep.subr.bf16.mxu0 %v1408
    %1417 = vmatpush1.bf16.msra.mxu0 %v1405
    %1418 = vmatprep.subr.bf16.mxu0 0
    %1419 = vmatpush1.bf16.msra.mxu0 0
    %1420 = vmatprep.subr.bf16.mxu0 0
    %1421 = vmatpush1.bf16.msra.mxu0 0
    %1422 = vmatprep.subr.bf16.mxu0 0
    %1423 = vmatpush1.bf16.msra.mxu0 0
    %1424 = vmatprep.subr.bf16.mxu0 0
    %1425 = vmatpush1.bf16.msra.mxu0 0
    %1426 = vmatprep.subr.bf16.mxu0 0
    %1427 = vmatpush1.bf16.msra.mxu0 0
    %1428 = vmatprep.subr.bf16.mxu0 0
    %1429 = vmatpush1.bf16.msra.mxu0 0
    %1430 = vmatprep.subr.bf16.mxu0 0
    %1431 = vmatpush1.bf16.msra.mxu0 0
    %1432 = vmatprep.subr.bf16.mxu0 0
    %1433 = vmatpush1.bf16.msra.mxu0 0
    %1434 = vmatprep.subr.bf16.mxu0 0
    %1435 = vmatpush1.bf16.msra.mxu0 0
    %1436 = vmatprep.subr.bf16.mxu0 0
    %1437 = vmatpush1.bf16.msra.mxu0 0
    %1438 = vmatprep.subr.bf16.mxu0 0
    %1439 = vmatpush1.bf16.msra.mxu0 0
    %1440 = vmatprep.subr.bf16.mxu0 0
    %1441 = vmatpush1.bf16.msra.mxu0 0
    %1442 = vmatprep.subr.bf16.mxu0 0
    %1443 = vmatpush1.bf16.msra.mxu0 0
    %1444 = vmatprep.subr.bf16.mxu0 0
    %1445 = vmatpush1.bf16.msra.mxu0 0
    %1446 = vmatprep.subr.bf16.mxu0 0
    %1447 = vmatpush1.bf16.msra.mxu0 0
    %1448 = vmatprep.mubr.bf16.mxu0 0
    %1449 = vmatmul.mubr.bf16.gmra.mrb[0].mxu0 %v1402
    %v1450 = vpop.f32.mrb[0].mxu0
    %v1451 = vadd.f32 0.0, %v1450
    %v1452 = vpop.f32.mrb[0].mxu0
    %v1453 = vadd.f32 0.0, %v1452
    %v1454 = vpop.f32.mrb[0].mxu0
    %v1455 = vpop.f32.mrb[0].mxu0
    %1456 = vdwg.mxu0
    %1457 = vmatprep.subr.bf16.mxu0 %v1414
    %1458 = vmatpush1.bf16.msra.mxu0 %v1411
    %1459 = vmatprep.subr.bf16.mxu0 0
    %1460 = vmatpush1.bf16.msra.mxu0 0
    %1461 = vmatprep.subr.bf16.mxu0 0
    %1462 = vmatpush1.bf16.msra.mxu0 0
    %1463 = vmatprep.subr.bf16.mxu0 0
    %1464 = vmatpush1.bf16.msra.mxu0 0
    %1465 = vmatprep.subr.bf16.mxu0 0
    %1466 = vmatpush1.bf16.msra.mxu0 0
    %1467 = vmatprep.subr.bf16.mxu0 0
    %1468 = vmatpush1.bf16.msra.mxu0 0
    %1469 = vmatprep.subr.bf16.mxu0 0
    %1470 = vmatpush1.bf16.msra.mxu0 0
    %1471 = vmatprep.subr.bf16.mxu0 0
    %1472 = vmatpush1.bf16.msra.mxu0 0
    %1473 = vmatprep.subr.bf16.mxu0 0
    %1474 = vmatpush1.bf16.msra.mxu0 0
    %1475 = vmatprep.subr.bf16.mxu0 0
    %1476 = vmatpush1.bf16.msra.mxu0 0
    %1477 = vmatprep.subr.bf16.mxu0 0
    %1478 = vmatpush1.bf16.msra.mxu0 0
    %1479 = vmatprep.subr.bf16.mxu0 0
    %1480 = vmatpush1.bf16.msra.mxu0 0
    %1481 = vmatprep.subr.bf16.mxu0 0
    %1482 = vmatpush1.bf16.msra.mxu0 0
    %1483 = vmatprep.subr.bf16.mxu0 0
    %1484 = vmatpush1.bf16.msra.mxu0 0
    %1485 = vmatprep.subr.bf16.mxu0 0
    %1486 = vmatpush1.bf16.msra.mxu0 0
    %1487 = vmatprep.subr.bf16.mxu0 0
    %1488 = vmatpush1.bf16.msra.mxu0 0
    %1489 = vmatprep.mubr.bf16.mxu0 0
    %1490 = vmatmul.mubr.bf16.gmra.mrb[0].mxu0 %v1402
    %v1491 = vpop.f32.mrb[0].mxu0
    %v1492 = vadd.f32 0.0, %v1491
    %v1493 = vpop.f32.mrb[0].mxu0
    %v1494 = vadd.f32 0.0, %v1493
    %v1495 = vpop.f32.mrb[0].mxu0
    %v1496 = vpop.f32.mrb[0].mxu0
    %1497 = vdwg.mxu0
    %v1498 = vadd.f32 %v1360, %v1451
    %v1499 = vadd.f32 %v1361, %v1453
    %v1500 = vadd.f32 %v1362, %v1492
    %v1501 = vadd.f32 %v1363, %v1494
    %v1502 = vld [vmem:[%s6] sm:$0xff]
    %1504 = vset.pattern.permute.xlu0 0
    %1505 = vperm.xlu0 %1504, %v1502
    %v1506 = vpop.permute.xlu0 %1505
    %v1508 = vadd.f32 %v1498, %v1506
    %v1509 = vadd.f32 %v1499, %v1506
    %v1510 = vadd.f32 %v1500, %v1506
    %v1511 = vadd.f32 %v1501, %v1506
    %v1512 = vmax.f32 %v1508, 0.0
    %v1513 = vmax.f32 %v1509, 0.0
    %v1514 = vmax.f32 %v1510, 0.0
    %v1515 = vmax.f32 %v1511, 0.0
    %1516 = vst [vmem:[#allocation5] sm:$0xff] %v1512
    %1517 = vst [vmem:[#allocation5 + $0x8] sm:$0xff] %v1513
    %1518 = vst [vmem:[#allocation5 + $0x10] sm:$0xff] %v1514
    %1519 = vst [vmem:[#allocation5 + $0x18] sm:$0xff] %v1515
    // Predicated region
    $region38: #{tpu_custom_call.1} parent=1 // pred_check
      _
    $region39: #{tpu_custom_call.1} parent=1 // pred_check_branch
      %1521 = sbr.rel (0) target = $region41
    $region40: #{tpu_custom_call.1} parent=1 // pred_region
      %s1523 = ssub.s32 512, 512
      %1524 = vsyncadd [#allocation4], %s1523
      %s1526 = sshll.u32 [#allocation5], 4
      %s1527 = int_to_ptr.vmem [resolvable:$true] %s1526
      %1529 = dma.vmem_to_hbm [thread:$0]  %s1527, 512, %s8, [#allocation4]
    $region41: #{tpu_custom_call.1} parent=1 // pred_fallthru
      _
    // Predicated region
    $region42: #{tpu_custom_call.1} parent=1 // pred_check
      _
    $region43: #{tpu_custom_call.1} parent=1 // pred_check_branch
      %1531 = sbr.rel (0) target = $region45
    $region44: #{tpu_custom_call.1} parent=1 // pred_region
      %1532 = dma.done [#allocation4], 512
    $region45: #{tpu_custom_call.1} parent=1 // pred_fallthru
      _
    %1533 = vsyncpa [#allocation3], 1
    %1534 = vsyncpa [#allocation4], 1

</llo_original>
